<compile_context>
chip_gen: v7x
topology: tpu7x:2x2x1
jax: 0.10.0
libtpu: 0.0.40
codegen_flags: <defaults>
</compile_context>

<pallas_src>
import functools
import math

import jax
import jax.numpy as jnp
from jax.experimental import pallas as pl
from jax.experimental.pallas import tpu as pltpu


_VMEM_LIMIT = 32 * 1024 * 1024  # safe on v5e/v6e/v7x


def _pick_tile(dim, cap, align):
    """Largest tile <= cap that divides dim and is a multiple of `align`;
    falls back to the full dimension (always a legal block)."""
    if dim <= cap:
        return dim
    t = (cap // align) * align
    while t >= align:
        if dim % t == 0:
            return t
        t -= align
    return dim


# ----------------------------- linear (+ activation) -----------------------------

def _linear_kernel(x_ref, w_ref, b_ref, o_ref, acc_ref, *, act, nk):
    @pl.when(pl.program_id(2) == 0)
    def _():
        acc_ref[...] = jnp.zeros_like(acc_ref)

    acc_ref[...] += jnp.dot(x_ref[...], w_ref[...],
                            preferred_element_type=jnp.float32)

    @pl.when(pl.program_id(2) == nk - 1)
    def _():
        y = acc_ref[...] + b_ref[...].astype(jnp.float32)
        if act == "gelu":
            # TODO(synk): tanh-approx gelu; PyTorch BertModel default is the
            # erf-based gelu (tiny numeric difference).
            y = 0.5 * y * (1.0 + jnp.tanh(
                math.sqrt(2.0 / math.pi) * (y + 0.044715 * y * y * y)))
        elif act == "tanh":
            y = jnp.tanh(y)
        o_ref[...] = y.astype(o_ref.dtype)


def linear(x, w, b, act=None, tm_cap=256, tn_cap=512, tk_cap=512):
    M, K = x.shape
    Kw, N = w.shape
    assert K == Kw
    tm = _pick_tile(M, tm_cap, 8)
    tn = _pick_tile(N, tn_cap, 128)
    tk = _pick_tile(K, tk_cap, 128)
    grid = (M // tm, N // tn, K // tk)
    return pl.pallas_call(
        functools.partial(_linear_kernel, act=act, nk=grid[2]),
        out_shape=jax.ShapeDtypeStruct((M, N), x.dtype),
        grid=grid,
        in_specs=[
            pl.BlockSpec((tm, tk), lambda i, j, k: (i, k)),
            pl.BlockSpec((tk, tn), lambda i, j, k: (k, j)),
            pl.BlockSpec((1, tn), lambda i, j, k: (0, j)),
        ],
        out_specs=pl.BlockSpec((tm, tn), lambda i, j, k: (i, j)),
        scratch_shapes=[pltpu.VMEM((tm, tn), jnp.float32)],
        compiler_params=pltpu.CompilerParams(
            dimension_semantics=("parallel", "parallel", "arbitrary"),
            vmem_limit_bytes=_VMEM_LIMIT),
    )(x, w, b.reshape(1, N))


# --------------------- linear + residual-add + LayerNorm (fused) ---------------------

def _linear_res_ln_kernel(x_ref, w_ref, b_ref, r_ref, g_ref, bt_ref, o_ref,
                          acc_ref, *, nk, eps):
    @pl.when(pl.program_id(1) == 0)
    def _():
        acc_ref[...] = jnp.zeros_like(acc_ref)

    acc_ref[...] += jnp.dot(x_ref[...], w_ref[...],
                            preferred_element_type=jnp.float32)

    @pl.when(pl.program_id(1) == nk - 1)
    def _():
        y = (acc_ref[...] + b_ref[...].astype(jnp.float32)
             + r_ref[...].astype(jnp.float32))
        mu = jnp.mean(y, axis=-1, keepdims=True)
        yc = y - mu
        var = jnp.mean(yc * yc, axis=-1, keepdims=True)
        out = yc * jax.lax.rsqrt(var + eps)
        out = out * g_ref[...].astype(jnp.float32) + bt_ref[...].astype(jnp.float32)
        o_ref[...] = out.astype(o_ref.dtype)


def linear_residual_layernorm(x, w, b, residual, gamma, beta, eps=1e-12,
                              tm_cap=256, tk_cap=512):
    """out = LayerNorm(x @ w + b + residual)   (LN over the full hidden dim)."""
    M, K = x.shape
    Kw, N = w.shape
    assert K == Kw and residual.shape == (M, N)
    tm = _pick_tile(M, tm_cap, 8)
    tk = _pick_tile(K, tk_cap, 128)
    grid = (M // tm, K // tk)
    return pl.pallas_call(
        functools.partial(_linear_res_ln_kernel, nk=grid[1], eps=eps),
        out_shape=jax.ShapeDtypeStruct((M, N), x.dtype),
        grid=grid,
        in_specs=[
            pl.BlockSpec((tm, tk), lambda i, k: (i, k)),
            pl.BlockSpec((tk, N), lambda i, k: (k, 0)),
            pl.BlockSpec((1, N), lambda i, k: (0, 0)),
            pl.BlockSpec((tm, N), lambda i, k: (i, 0)),
            pl.BlockSpec((1, N), lambda i, k: (0, 0)),
            pl.BlockSpec((1, N), lambda i, k: (0, 0)),
        ],
        out_specs=pl.BlockSpec((tm, N), lambda i, k: (i, 0)),
        scratch_shapes=[pltpu.VMEM((tm, N), jnp.float32)],
        compiler_params=pltpu.CompilerParams(
            dimension_semantics=("parallel", "arbitrary"),
            vmem_limit_bytes=_VMEM_LIMIT),
    )(x, w, b.reshape(1, N), residual, gamma.reshape(1, N), beta.reshape(1, N))


# ----------------------------- standalone LayerNorm -----------------------------

def _layernorm_kernel(x_ref, g_ref, b_ref, o_ref, *, eps):
    x = x_ref[...].astype(jnp.float32)
    mu = jnp.mean(x, axis=-1, keepdims=True)
    xc = x - mu
    var = jnp.mean(xc * xc, axis=-1, keepdims=True)
    y = xc * jax.lax.rsqrt(var + eps)
    o_ref[...] = (y * g_ref[...] + b_ref[...]).astype(o_ref.dtype)


def layernorm(x, gamma, beta, eps=1e-12, tm_cap=512):
    M, N = x.shape
    tm = _pick_tile(M, tm_cap, 8)
    return pl.pallas_call(
        functools.partial(_layernorm_kernel, eps=eps),
        out_shape=jax.ShapeDtypeStruct((M, N), x.dtype),
        grid=(M // tm,),
        in_specs=[
            pl.BlockSpec((tm, N), lambda i: (i, 0)),
            pl.BlockSpec((1, N), lambda i: (0, 0)),
            pl.BlockSpec((1, N), lambda i: (0, 0)),
        ],
        out_specs=pl.BlockSpec((tm, N), lambda i: (i, 0)),
        compiler_params=pltpu.CompilerParams(
            dimension_semantics=("parallel",),
            vmem_limit_bytes=_VMEM_LIMIT),
    )(x, gamma.reshape(1, N), beta.reshape(1, N))


# ----------------------------- attention -----------------------------

def _attention_kernel(q_ref, k_ref, v_ref, bias_ref, o_ref):
    q = q_ref[0]                      # (Hb, S, Dh), already scaled by 1/sqrt(Dh)
    k = k_ref[0]
    v = v_ref[0]
    s = jnp.einsum("hqd,hkd->hqk", q, k,
                   preferred_element_type=jnp.float32)
    s = s + bias_ref[0, 0].astype(jnp.float32)          # (1, S) key-position bias
    m = jnp.max(s, axis=-1, keepdims=True)
    p = jnp.exp(s - m)
    denom = jnp.sum(p, axis=-1, keepdims=True)
    p = p * pl.reciprocal(denom, approx=True)
    out = jnp.einsum("hqk,hkd->hqd", p.astype(v.dtype), v,
                     preferred_element_type=jnp.float32)
    o_ref[0] = out.astype(o_ref.dtype)


def attention(q, k, v, bias):
    # q, k, v: (B, NH, S, Dh)   bias: (B, 1, 1, S) additive mask bias
    B, NH, S, Dh = q.shape
    hb = 1
    for cand in range(min(NH, 8), 0, -1):   # batch several heads per grid step
        if NH % cand == 0:
            hb = cand
            break
    grid = (B, NH // hb)
    # TODO(synk): for long sequences this should become a KV-tiled online-softmax
    # (flash-style) kernel; the dense (S,S) score block is fine at these shapes.
    return pl.pallas_call(
        _attention_kernel,
        out_shape=jax.ShapeDtypeStruct((B, NH, S, Dh), q.dtype),
        grid=grid,
        in_specs=[
            pl.BlockSpec((1, hb, S, Dh), lambda b, h: (b, h, 0, 0)),
            pl.BlockSpec((1, hb, S, Dh), lambda b, h: (b, h, 0, 0)),
            pl.BlockSpec((1, hb, S, Dh), lambda b, h: (b, h, 0, 0)),
            pl.BlockSpec((1, 1, 1, S), lambda b, h: (b, 0, 0, 0)),
        ],
        out_specs=pl.BlockSpec((1, hb, S, Dh), lambda b, h: (b, h, 0, 0)),
        compiler_params=pltpu.CompilerParams(
            dimension_semantics=("parallel", "parallel"),
            vmem_limit_bytes=_VMEM_LIMIT),
    )(q, k, v, bias)


# ----------------------------- Model (params + forward) -----------------------------

class Config:
    def __init__(self, vocab_size, hidden_size, num_hidden_layers,
                 num_attention_heads, intermediate_size,
                 max_position_embeddings, type_vocab_size):
        self.vocab_size = vocab_size
        self.hidden_size = hidden_size
        self.num_hidden_layers = num_hidden_layers
        self.num_attention_heads = num_attention_heads
        self.intermediate_size = intermediate_size
        self.max_position_embeddings = max_position_embeddings
        self.type_vocab_size = type_vocab_size


def make_params(key, cfg):
    H, I = cfg.hidden_size, cfg.intermediate_size
    NH = cfg.num_attention_heads
    DH = H // NH
    scale = 1.0 / math.sqrt(DH)
    keys = iter(jax.random.split(key, 4 + 6 * cfg.num_hidden_layers))
    nrm = lambda shape: 0.02 * jax.random.normal(next(keys), shape, jnp.float32)
    params = {
        "word_emb": nrm((cfg.vocab_size, H)),
        "pos_emb": nrm((cfg.max_position_embeddings, H)),
        "type_emb": nrm((cfg.type_vocab_size, H)),
        "emb_ln_g": jnp.ones((H,), jnp.float32),
        "emb_ln_b": jnp.zeros((H,), jnp.float32),
        "pooler_w": nrm((H, H)),
        "pooler_b": jnp.zeros((H,), jnp.float32),
        "layers": [],
    }
    for _ in range(cfg.num_hidden_layers):
        q_w, k_w, v_w = nrm((H, H)), nrm((H, H)), nrm((H, H))
        # Fused QKV projection; fold the 1/sqrt(Dh) attention scale into Q.
        qkv_w = jnp.concatenate([q_w * scale, k_w, v_w], axis=1)   # (H, 3H)
        qkv_b = jnp.zeros((3 * H,), jnp.float32)
        params["layers"].append({
            "qkv_w": qkv_w, "qkv_b": qkv_b,
            "ao_w": nrm((H, H)), "ao_b": jnp.zeros((H,), jnp.float32),
            "attn_ln_g": jnp.ones((H,), jnp.float32),
            "attn_ln_b": jnp.zeros((H,), jnp.float32),
            "i_w": nrm((H, I)), "i_b": jnp.zeros((I,), jnp.float32),
            "o_w": nrm((I, H)), "o_b": jnp.zeros((H,), jnp.float32),
            "out_ln_g": jnp.ones((H,), jnp.float32),
            "out_ln_b": jnp.zeros((H,), jnp.float32),
        })
    return params


def bert_forward(params, cfg, input_ids, token_type_ids=None, attention_mask=None):
    B, S = input_ids.shape
    H = cfg.hidden_size
    NH = cfg.num_attention_heads
    DH = H // NH

    if token_type_ids is None:
        token_type_ids = jnp.zeros_like(input_ids)
    if attention_mask is None:
        attention_mask = jnp.ones((B, S), jnp.float32)

    # Standard BERT extended mask: scores += (1 - mask) * -10000.
    # Kept per-batch (B,1,1,S); the attention BlockSpec indexes it by batch,
    # so no NH-fold broadcast materializes in HBM.
    bias = ((1.0 - attention_mask.astype(jnp.float32)) * -10000.0).reshape(B, 1, 1, S)

    # ---- embeddings (gathers in JAX, LayerNorm in Pallas) ----
    we = jnp.take(params["word_emb"], input_ids, axis=0)        # (B, S, H)
    pe = params["pos_emb"][:S][None, :, :]                      # (1, S, H)
    te = jnp.take(params["type_emb"], token_type_ids, axis=0)   # (B, S, H)
    x = (we + pe + te).reshape(B * S, H)
    x = layernorm(x, params["emb_ln_g"], params["emb_ln_b"])
    # TODO(synk): dropout omitted (inference semantics, p=0 equivalent).

    for lp in params["layers"]:
        # fused Q/K/V projection (scale folded into the Q weights)
        qkv = linear(x, lp["qkv_w"], lp["qkv_b"])                # (B*S, 3H)
        # TODO(synk): the remaining head split/merge transposes could be folded
        # into the attention BlockSpecs (lane-sliced heads) to avoid relayouts.
        qkv = qkv.reshape(B, S, 3, NH, DH).transpose(2, 0, 3, 1, 4)  # (3,B,NH,S,DH)
        ctx = attention(qkv[0], qkv[1], qkv[2], bias)            # (B, NH, S, DH)
        ctx = ctx.transpose(0, 2, 1, 3).reshape(B * S, H)
        # attention output projection + residual + LayerNorm (fused epilogue)
        x = linear_residual_layernorm(ctx, lp["ao_w"], lp["ao_b"], x,
                                      lp["attn_ln_g"], lp["attn_ln_b"])
        # FFN: up-projection + gelu, then down-projection + residual + LN (fused)
        inter = linear(x, lp["i_w"], lp["i_b"], act="gelu")
        x = linear_residual_layernorm(inter, lp["o_w"], lp["o_b"], x,
                                      lp["out_ln_g"], lp["out_ln_b"])

    sequence_output = x.reshape(B, S, H)
    pooled_output = linear(sequence_output[:, 0, :],
                           params["pooler_w"], params["pooler_b"], act="tanh")
    return sequence_output, pooled_output


# ----------------------------- main -----------------------------

if __name__ == "__main__":
    cfg = Config(vocab_size=128, hidden_size=32, num_hidden_layers=2,
                 num_attention_heads=4, intermediate_size=64,
                 max_position_embeddings=64, type_vocab_size=2)

    key = jax.random.PRNGKey(0)
    pkey, ikey = jax.random.split(key)
    params = make_params(pkey, cfg)

    B, S = 2, 8
    input_ids = jax.random.randint(ikey, (B, S), 0, cfg.vocab_size, dtype=jnp.int32)
    token_type_ids = jnp.zeros((B, S), jnp.int32)
    attention_mask = jnp.ones((B, S), jnp.float32).at[:, S - 2:].set(0.0)

    fwd = jax.jit(lambda p, ids, tt, am: bert_forward(p, cfg, ids, tt, am))
    seq_out, pooled = fwd(params, input_ids, token_type_ids, attention_mask)
    jax.block_until_ready((seq_out, pooled))

    assert seq_out.shape == (B, S, cfg.hidden_size)
    assert pooled.shape == (B, cfg.hidden_size)
    assert bool(jnp.isfinite(seq_out).all()) and bool(jnp.isfinite(pooled).all())
    print("KERNEL_OK")
</pallas_src>

<mosaic_0001>
module attributes {stable_mosaic.version = 11 : i64} {
  func.func @_layernorm_kernel(%arg0: i32, %arg1: memref<16x32xf32, #tpu.memory_space<vmem>>, %arg2: memref<1x32xf32, #tpu.memory_space<vmem>>, %arg3: memref<1x32xf32, #tpu.memory_space<vmem>>, %arg4: memref<16x32xf32, #tpu.memory_space<vmem>>) attributes {dimension_semantics = [#tpu.dimension_semantics<parallel>], iteration_bounds = array<i64: 1>, scalar_prefetch = 0 : i64, scratch_operands = 0 : i64, tpu.core_type = #tpu.core_type<tc>, window_params = [{transform_indices = @transform_0, window_bounds = array<i64: 16, 32>}, {pipeline_mode = #tpu.pipeline_mode<synchronous>, transform_indices = @transform_1, window_bounds = array<i64: 1, 32>}, {pipeline_mode = #tpu.pipeline_mode<synchronous>, transform_indices = @transform_2, window_bounds = array<i64: 1, 32>}, {transform_indices = @transform_3, window_bounds = array<i64: 16, 32>}]} {
    %c0 = arith.constant 0 : index
    %c0_0 = arith.constant 0 : index
    %0 = vector.load %arg1[%c0, %c0_0] : memref<16x32xf32, #tpu.memory_space<vmem>>, vector<16x32xf32>
    %cst = arith.constant dense<0.000000e+00> : vector<16xf32>
    %1 = vector.multi_reduction <add>, %0, %cst [1] : vector<16x32xf32> to vector<16xf32>
    %2 = vector.shape_cast %1 : vector<16xf32> to vector<16x1xf32>
    %cst_1 = arith.constant 3.200000e+01 : f32
    %3 = vector.broadcast %cst_1 : f32 to vector<16x1xf32>
    %4 = arith.divf %2, %3 : vector<16x1xf32>
    %5 = vector.broadcast %4 : vector<16x1xf32> to vector<16x32xf32>
    %6 = arith.subf %0, %5 : vector<16x32xf32>
    %7 = arith.mulf %6, %6 : vector<16x32xf32>
    %cst_2 = arith.constant dense<0.000000e+00> : vector<16xf32>
    %8 = vector.multi_reduction <add>, %7, %cst_2 [1] : vector<16x32xf32> to vector<16xf32>
    %9 = vector.shape_cast %8 : vector<16xf32> to vector<16x1xf32>
    %cst_3 = arith.constant 3.200000e+01 : f32
    %10 = vector.broadcast %cst_3 : f32 to vector<16x1xf32>
    %11 = arith.divf %9, %10 : vector<16x1xf32>
    %cst_4 = arith.constant 9.99999996E-13 : f32
    %12 = vector.broadcast %cst_4 : f32 to vector<16x1xf32>
    %13 = arith.addf %11, %12 : vector<16x1xf32>
    %14 = math.rsqrt %13 : vector<16x1xf32>
    %15 = vector.broadcast %14 : vector<16x1xf32> to vector<16x32xf32>
    %16 = arith.mulf %6, %15 : vector<16x32xf32>
    %c0_5 = arith.constant 0 : index
    %c0_6 = arith.constant 0 : index
    %17 = vector.load %arg2[%c0_5, %c0_6] : memref<1x32xf32, #tpu.memory_space<vmem>>, vector<1x32xf32>
    %18 = vector.broadcast %17 : vector<1x32xf32> to vector<16x32xf32>
    %19 = arith.mulf %16, %18 : vector<16x32xf32>
    %c0_7 = arith.constant 0 : index
    %c0_8 = arith.constant 0 : index
    %20 = vector.load %arg3[%c0_7, %c0_8] : memref<1x32xf32, #tpu.memory_space<vmem>>, vector<1x32xf32>
    %21 = vector.broadcast %20 : vector<1x32xf32> to vector<16x32xf32>
    %22 = arith.addf %19, %21 : vector<16x32xf32>
    %c0_9 = arith.constant 0 : index
    %c0_10 = arith.constant 0 : index
    %23 = vector.load %arg4[%c0_9, %c0_10] : memref<16x32xf32, #tpu.memory_space<vmem>>, vector<16x32xf32>
    tpu.vector_store %arg4[%c0_9, %c0_10], %22 {strides = array<i32>} : memref<16x32xf32, #tpu.memory_space<vmem>>, vector<16x32xf32>,
    return
  }
  func.func @transform_0(%arg0: i32) -> (i32, i32) {
    %c0_i32 = arith.constant 0 : i32
    %c0_i32_0 = arith.constant 0 : i32
    return %arg0, %c0_i32 : i32, i32
  }
  func.func @transform_1(%arg0: i32) -> (i32, i32) {
    %c0_i32 = arith.constant 0 : i32
    %c0_i32_0 = arith.constant 0 : i32
    %c0_i32_1 = arith.constant 0 : i32
    return %c0_i32, %c0_i32_0 : i32, i32
  }
  func.func @transform_2(%arg0: i32) -> (i32, i32) {
    %c0_i32 = arith.constant 0 : i32
    %c0_i32_0 = arith.constant 0 : i32
    %c0_i32_1 = arith.constant 0 : i32
    return %c0_i32, %c0_i32_0 : i32, i32
  }
  func.func @transform_3(%arg0: i32) -> (i32, i32) {
    %c0_i32 = arith.constant 0 : i32
    %c0_i32_0 = arith.constant 0 : i32
    return %arg0, %c0_i32 : i32, i32
  }
}

module attributes {stable_mosaic.version = 11 : i64} {
  func.func @_linear_kernel(%arg0: i32, %arg1: i32, %arg2: i32, %arg3: memref<16x32xf32, #tpu.memory_space<vmem>>, %arg4: memref<32x96xf32, #tpu.memory_space<vmem>>, %arg5: memref<1x96xf32, #tpu.memory_space<vmem>>, %arg6: memref<16x96xf32, #tpu.memory_space<vmem>>, %arg7: memref<16x96xf32, #tpu.memory_space<vmem>>) attributes {dimension_semantics = [#tpu.dimension_semantics<parallel>, #tpu.dimension_semantics<parallel>, #tpu.dimension_semantics<arbitrary>], iteration_bounds = array<i64: 1, 1, 1>, scalar_prefetch = 0 : i64, scratch_operands = 1 : i64, tpu.core_type = #tpu.core_type<tc>, window_params = [{transform_indices = @transform_0, window_bounds = array<i64: 16, 32>}, {transform_indices = @transform_1, window_bounds = array<i64: 32, 96>}, {transform_indices = @transform_2, window_bounds = array<i64: 1, 96>}, {transform_indices = @transform_3, window_bounds = array<i64: 16, 96>}]} {
    %c0_i32 = arith.constant 0 : i32
    %0 = arith.cmpi eq, %arg2, %c0_i32 : i32
    %1 = arith.extui %0 : i1 to i32
    %c0_i32_0 = arith.constant 0 : i32
    %2 = arith.cmpi ne, %1, %c0_i32_0 : i32
    scf.if %2 {
      %cst_10 = arith.constant 0.000000e+00 : f32
      %12 = vector.broadcast %cst_10 : f32 to vector<16x96xf32>
      %c0_11 = arith.constant 0 : index
      %c0_12 = arith.constant 0 : index
      %13 = vector.load %arg7[%c0_11, %c0_12] : memref<16x96xf32, #tpu.memory_space<vmem>>, vector<16x96xf32>
      tpu.vector_store %arg7[%c0_11, %c0_12], %12 {strides = array<i32>} : memref<16x96xf32, #tpu.memory_space<vmem>>, vector<16x96xf32>,
    } else {
    }
    %c0 = arith.constant 0 : index
    %c0_1 = arith.constant 0 : index
    %3 = vector.load %arg7[%c0, %c0_1] : memref<16x96xf32, #tpu.memory_space<vmem>>, vector<16x96xf32>
    %c0_2 = arith.constant 0 : index
    %c0_3 = arith.constant 0 : index
    %4 = vector.load %arg3[%c0_2, %c0_3] : memref<16x32xf32, #tpu.memory_space<vmem>>, vector<16x32xf32>
    %c0_4 = arith.constant 0 : index
    %c0_5 = arith.constant 0 : index
    %5 = vector.load %arg4[%c0_4, %c0_5] : memref<32x96xf32, #tpu.memory_space<vmem>>, vector<32x96xf32>
    %cst = arith.constant dense<0.000000e+00> : vector<16x96xf32>
    %6 = tpu.matmul %4, %5, %cst {dimension_numbers = #tpu.dot_dimension_numbers<[1], [0], [0], [1], [0, 0, 1, 1], [], []>} : vector<16x32xf32>, vector<32x96xf32>, vector<16x96xf32> -> vector<16x96xf32>
    %7 = arith.addf %3, %6 : vector<16x96xf32>
    %c0_6 = arith.constant 0 : index
    %c0_7 = arith.constant 0 : index
    %8 = vector.load %arg7[%c0_6, %c0_7] : memref<16x96xf32, #tpu.memory_space<vmem>>, vector<16x96xf32>
    tpu.vector_store %arg7[%c0_6, %c0_7], %7 {strides = array<i32>} : memref<16x96xf32, #tpu.memory_space<vmem>>, vector<16x96xf32>,
    %c0_i32_8 = arith.constant 0 : i32
    %9 = arith.cmpi eq, %arg2, %c0_i32_8 : i32
    %10 = arith.extui %9 : i1 to i32
    %c0_i32_9 = arith.constant 0 : i32
    %11 = arith.cmpi ne, %10, %c0_i32_9 : i32
    scf.if %11 {
      %c0_10 = arith.constant 0 : index
      %c0_11 = arith.constant 0 : index
      %12 = vector.load %arg7[%c0_10, %c0_11] : memref<16x96xf32, #tpu.memory_space<vmem>>, vector<16x96xf32>
      %c0_12 = arith.constant 0 : index
      %c0_13 = arith.constant 0 : index
      %13 = vector.load %arg5[%c0_12, %c0_13] : memref<1x96xf32, #tpu.memory_space<vmem>>, vector<1x96xf32>
      %14 = vector.broadcast %13 : vector<1x96xf32> to vector<16x96xf32>
      %15 = arith.addf %12, %14 : vector<16x96xf32>
      %c0_14 = arith.constant 0 : index
      %c0_15 = arith.constant 0 : index
      %16 = vector.load %arg6[%c0_14, %c0_15] : memref<16x96xf32, #tpu.memory_space<vmem>>, vector<16x96xf32>
      tpu.vector_store %arg6[%c0_14, %c0_15], %15 {strides = array<i32>} : memref<16x96xf32, #tpu.memory_space<vmem>>, vector<16x96xf32>,
    } else {
    }
    return
  }
  func.func @transform_0(%arg0: i32, %arg1: i32, %arg2: i32) -> (i32, i32) {
    %c0_i32 = arith.constant 0 : i32
    return %arg0, %arg2 : i32, i32
  }
  func.func @transform_1(%arg0: i32, %arg1: i32, %arg2: i32) -> (i32, i32) {
    %c0_i32 = arith.constant 0 : i32
    return %arg2, %arg1 : i32, i32
  }
  func.func @transform_2(%arg0: i32, %arg1: i32, %arg2: i32) -> (i32, i32) {
    %c0_i32 = arith.constant 0 : i32
    %c0_i32_0 = arith.constant 0 : i32
    return %c0_i32, %arg1 : i32, i32
  }
  func.func @transform_3(%arg0: i32, %arg1: i32, %arg2: i32) -> (i32, i32) {
    %c0_i32 = arith.constant 0 : i32
    return %arg0, %arg1 : i32, i32
  }
}

module attributes {stable_mosaic.version = 11 : i64} {
  func.func @_attention_kernel(%arg0: i32, %arg1: i32, %arg2: memref<1x4x8x8xf32, #tpu.memory_space<vmem>>, %arg3: memref<1x4x8x8xf32, #tpu.memory_space<vmem>>, %arg4: memref<1x4x8x8xf32, #tpu.memory_space<vmem>>, %arg5: memref<1x1x1x8xf32, #tpu.memory_space<vmem>>, %arg6: memref<1x4x8x8xf32, #tpu.memory_space<vmem>>) attributes {dimension_semantics = [#tpu.dimension_semantics<parallel>, #tpu.dimension_semantics<parallel>], iteration_bounds = array<i64: 2, 1>, scalar_prefetch = 0 : i64, scratch_operands = 0 : i64, tpu.core_type = #tpu.core_type<tc>, window_params = [{transform_indices = @transform_0, window_bounds = array<i64: 1, 4, 8, 8>}, {transform_indices = @transform_1, window_bounds = array<i64: 1, 4, 8, 8>}, {transform_indices = @transform_2, window_bounds = array<i64: 1, 4, 8, 8>}, {transform_indices = @transform_3, window_bounds = array<i64: 1, 1, 1, 8>}, {transform_indices = @transform_4, window_bounds = array<i64: 1, 4, 8, 8>}]} {
    %c0 = arith.constant 0 : index
    %c0_0 = arith.constant 0 : index
    %c0_1 = arith.constant 0 : index
    %c0_2 = arith.constant 0 : index
    %0 = vector.load %arg2[%c0, %c0_0, %c0_1, %c0_2] : memref<1x4x8x8xf32, #tpu.memory_space<vmem>>, vector<1x4x8x8xf32>
    %1 = vector.shape_cast %0 : vector<1x4x8x8xf32> to vector<4x8x8xf32>
    %c0_3 = arith.constant 0 : index
    %c0_4 = arith.constant 0 : index
    %c0_5 = arith.constant 0 : index
    %c0_6 = arith.constant 0 : index
    %2 = vector.load %arg3[%c0_3, %c0_4, %c0_5, %c0_6] : memref<1x4x8x8xf32, #tpu.memory_space<vmem>>, vector<1x4x8x8xf32>
    %3 = vector.shape_cast %2 : vector<1x4x8x8xf32> to vector<4x8x8xf32>
    %c0_7 = arith.constant 0 : index
    %c0_8 = arith.constant 0 : index
    %c0_9 = arith.constant 0 : index
    %c0_10 = arith.constant 0 : index
    %4 = vector.load %arg4[%c0_7, %c0_8, %c0_9, %c0_10] : memref<1x4x8x8xf32, #tpu.memory_space<vmem>>, vector<1x4x8x8xf32>
    %5 = vector.shape_cast %4 : vector<1x4x8x8xf32> to vector<4x8x8xf32>
    "tpu.trace_start"() <{level = 10 : i32, message = "hqd,hkd->hqk"}> : () -> ()
    %cst = arith.constant dense<0.000000e+00> : vector<4x8x8xf32>
    %6 = tpu.matmul %1, %3, %cst {dimension_numbers = #tpu.dot_dimension_numbers<[2], [2], [1], [1], [0, 0, 0, 1, 1, 1], [0], [0]>} : vector<4x8x8xf32>, vector<4x8x8xf32>, vector<4x8x8xf32> -> vector<4x8x8xf32>
    "tpu.trace_stop"() : () -> ()
    %c0_11 = arith.constant 0 : index
    %c0_12 = arith.constant 0 : index
    %c0_13 = arith.constant 0 : index
    %c0_14 = arith.constant 0 : index
    %7 = vector.load %arg5[%c0_11, %c0_12, %c0_13, %c0_14] : memref<1x1x1x8xf32, #tpu.memory_space<vmem>>, vector<1x1x1x8xf32>
    %8 = vector.shape_cast %7 : vector<1x1x1x8xf32> to vector<1x8xf32>
    %9 = vector.shape_cast %8 : vector<1x8xf32> to vector<1x1x8xf32>
    %10 = vector.broadcast %9 : vector<1x1x8xf32> to vector<4x8x8xf32>
    %11 = arith.addf %6, %10 : vector<4x8x8xf32>
    %cst_15 = arith.constant dense<0xFF800000> : vector<4x8xf32>
    %12 = vector.multi_reduction <maximumf>, %11, %cst_15 [2] : vector<4x8x8xf32> to vector<4x8xf32>
    %13 = vector.shape_cast %12 : vector<4x8xf32> to vector<4x8x1xf32>
    %14 = vector.broadcast %13 : vector<4x8x1xf32> to vector<4x8x8xf32>
    %15 = arith.subf %11, %14 : vector<4x8x8xf32>
    %16 = math.exp %15 : vector<4x8x8xf32>
    %cst_16 = arith.constant dense<0.000000e+00> : vector<4x8xf32>
    %17 = vector.multi_reduction <add>, %16, %cst_16 [2] : vector<4x8x8xf32> to vector<4x8xf32>
    %18 = vector.shape_cast %17 : vector<4x8xf32> to vector<4x8x1xf32>
    %19 = tpu.reciprocal %18 {approx = true} : vector<4x8x1xf32> -> vector<4x8x1xf32>
    %20 = vector.broadcast %19 : vector<4x8x1xf32> to vector<4x8x8xf32>
    %21 = arith.mulf %16, %20 : vector<4x8x8xf32>
    "tpu.trace_start"() <{level = 10 : i32, message = "hqk,hkd->hqd"}> : () -> ()
    %cst_17 = arith.constant dense<0.000000e+00> : vector<4x8x8xf32>
    %22 = tpu.matmul %21, %5, %cst_17 {dimension_numbers = #tpu.dot_dimension_numbers<[2], [1], [1], [2], [0, 0, 0, 1, 1, 2], [0], [0]>} : vector<4x8x8xf32>, vector<4x8x8xf32>, vector<4x8x8xf32> -> vector<4x8x8xf32>
    "tpu.trace_stop"() : () -> ()
    %c0_18 = arith.constant 0 : index
    %c0_19 = arith.constant 0 : index
    %c0_20 = arith.constant 0 : index
    %c0_21 = arith.constant 0 : index
    %23 = vector.load %arg6[%c0_18, %c0_19, %c0_20, %c0_21] : memref<1x4x8x8xf32, #tpu.memory_space<vmem>>, vector<1x4x8x8xf32>
    %24 = vector.shape_cast %23 : vector<1x4x8x8xf32> to vector<4x8x8xf32>
    %25 = vector.shape_cast %22 : vector<4x8x8xf32> to vector<1x4x8x8xf32>
    tpu.vector_store %arg6[%c0_18, %c0_19, %c0_20, %c0_21], %25 {strides = array<i32>} : memref<1x4x8x8xf32, #tpu.memory_space<vmem>>, vector<1x4x8x8xf32>,
    return
  }
  func.func @transform_0(%arg0: i32, %arg1: i32) -> (i32, i32, i32, i32) {
    %c0_i32 = arith.constant 0 : i32
    %c0_i32_0 = arith.constant 0 : i32
    %c0_i32_1 = arith.constant 0 : i32
    return %arg0, %arg1, %c0_i32, %c0_i32_0 : i32, i32, i32, i32
  }
  func.func @transform_1(%arg0: i32, %arg1: i32) -> (i32, i32, i32, i32) {
    %c0_i32 = arith.constant 0 : i32
    %c0_i32_0 = arith.constant 0 : i32
    %c0_i32_1 = arith.constant 0 : i32
    return %arg0, %arg1, %c0_i32, %c0_i32_0 : i32, i32, i32, i32
  }
  func.func @transform_2(%arg0: i32, %arg1: i32) -> (i32, i32, i32, i32) {
    %c0_i32 = arith.constant 0 : i32
    %c0_i32_0 = arith.constant 0 : i32
    %c0_i32_1 = arith.constant 0 : i32
    return %arg0, %arg1, %c0_i32, %c0_i32_0 : i32, i32, i32, i32
  }
  func.func @transform_3(%arg0: i32, %arg1: i32) -> (i32, i32, i32, i32) {
    %c0_i32 = arith.constant 0 : i32
    %c0_i32_0 = arith.constant 0 : i32
    %c0_i32_1 = arith.constant 0 : i32
    %c0_i32_2 = arith.constant 0 : i32
    return %arg0, %c0_i32, %c0_i32_0, %c0_i32_1 : i32, i32, i32, i32
  }
  func.func @transform_4(%arg0: i32, %arg1: i32) -> (i32, i32, i32, i32) {
    %c0_i32 = arith.constant 0 : i32
    %c0_i32_0 = arith.constant 0 : i32
    %c0_i32_1 = arith.constant 0 : i32
    return %arg0, %arg1, %c0_i32, %c0_i32_0 : i32, i32, i32, i32
  }
}

module attributes {stable_mosaic.version = 11 : i64} {
  func.func @_linear_res_ln_kernel(%arg0: i32, %arg1: i32, %arg2: memref<16x32xf32, #tpu.memory_space<vmem>>, %arg3: memref<32x32xf32, #tpu.memory_space<vmem>>, %arg4: memref<1x32xf32, #tpu.memory_space<vmem>>, %arg5: memref<16x32xf32, #tpu.memory_space<vmem>>, %arg6: memref<1x32xf32, #tpu.memory_space<vmem>>, %arg7: memref<1x32xf32, #tpu.memory_space<vmem>>, %arg8: memref<16x32xf32, #tpu.memory_space<vmem>>, %arg9: memref<16x32xf32, #tpu.memory_space<vmem>>) attributes {dimension_semantics = [#tpu.dimension_semantics<parallel>, #tpu.dimension_semantics<arbitrary>], iteration_bounds = array<i64: 1, 1>, scalar_prefetch = 0 : i64, scratch_operands = 1 : i64, tpu.core_type = #tpu.core_type<tc>, window_params = [{transform_indices = @transform_0, window_bounds = array<i64: 16, 32>}, {transform_indices = @transform_1, window_bounds = array<i64: 32, 32>}, {pipeline_mode = #tpu.pipeline_mode<synchronous>, transform_indices = @transform_2, window_bounds = array<i64: 1, 32>}, {transform_indices = @transform_3, window_bounds = array<i64: 16, 32>}, {pipeline_mode = #tpu.pipeline_mode<synchronous>, transform_indices = @transform_4, window_bounds = array<i64: 1, 32>}, {pipeline_mode = #tpu.pipeline_mode<synchronous>, transform_indices = @transform_5, window_bounds = array<i64: 1, 32>}, {transform_indices = @transform_6, window_bounds = array<i64: 16, 32>}]} {
    %c0_i32 = arith.constant 0 : i32
    %0 = arith.cmpi eq, %arg1, %c0_i32 : i32
    %1 = arith.extui %0 : i1 to i32
    %c0_i32_0 = arith.constant 0 : i32
    %2 = arith.cmpi ne, %1, %c0_i32_0 : i32
    scf.if %2 {
      %cst_10 = arith.constant 0.000000e+00 : f32
      %12 = vector.broadcast %cst_10 : f32 to vector<16x32xf32>
      %c0_11 = arith.constant 0 : index
      %c0_12 = arith.constant 0 : index
      %13 = vector.load %arg9[%c0_11, %c0_12] : memref<16x32xf32, #tpu.memory_space<vmem>>, vector<16x32xf32>
      tpu.vector_store %arg9[%c0_11, %c0_12], %12 {strides = array<i32>} : memref<16x32xf32, #tpu.memory_space<vmem>>, vector<16x32xf32>,
    } else {
    }
    %c0 = arith.constant 0 : index
    %c0_1 = arith.constant 0 : index
    %3 = vector.load %arg9[%c0, %c0_1] : memref<16x32xf32, #tpu.memory_space<vmem>>, vector<16x32xf32>
    %c0_2 = arith.constant 0 : index
    %c0_3 = arith.constant 0 : index
    %4 = vector.load %arg2[%c0_2, %c0_3] : memref<16x32xf32, #tpu.memory_space<vmem>>, vector<16x32xf32>
    %c0_4 = arith.constant 0 : index
    %c0_5 = arith.constant 0 : index
    %5 = vector.load %arg3[%c0_4, %c0_5] : memref<32x32xf32, #tpu.memory_space<vmem>>, vector<32x32xf32>
    %cst = arith.constant dense<0.000000e+00> : vector<16x32xf32>
    %6 = tpu.matmul %4, %5, %cst {dimension_numbers = #tpu.dot_dimension_numbers<[1], [0], [0], [1], [0, 0, 1, 1], [], []>} : vector<16x32xf32>, vector<32x32xf32>, vector<16x32xf32> -> vector<16x32xf32>
    %7 = arith.addf %3, %6 : vector<16x32xf32>
    %c0_6 = arith.constant 0 : index
    %c0_7 = arith.constant 0 : index
    %8 = vector.load %arg9[%c0_6, %c0_7] : memref<16x32xf32, #tpu.memory_space<vmem>>, vector<16x32xf32>
    tpu.vector_store %arg9[%c0_6, %c0_7], %7 {strides = array<i32>} : memref<16x32xf32, #tpu.memory_space<vmem>>, vector<16x32xf32>,
    %c0_i32_8 = arith.constant 0 : i32
    %9 = arith.cmpi eq, %arg1, %c0_i32_8 : i32
    %10 = arith.extui %9 : i1 to i32
    %c0_i32_9 = arith.constant 0 : i32
    %11 = arith.cmpi ne, %10, %c0_i32_9 : i32
    scf.if %11 {
      %c0_10 = arith.constant 0 : index
      %c0_11 = arith.constant 0 : index
      %12 = vector.load %arg9[%c0_10, %c0_11] : memref<16x32xf32, #tpu.memory_space<vmem>>, vector<16x32xf32>
      %c0_12 = arith.constant 0 : index
      %c0_13 = arith.constant 0 : index
      %13 = vector.load %arg4[%c0_12, %c0_13] : memref<1x32xf32, #tpu.memory_space<vmem>>, vector<1x32xf32>
      %14 = vector.broadcast %13 : vector<1x32xf32> to vector<16x32xf32>
      %15 = arith.addf %12, %14 : vector<16x32xf32>
      %c0_14 = arith.constant 0 : index
      %c0_15 = arith.constant 0 : index
      %16 = vector.load %arg5[%c0_14, %c0_15] : memref<16x32xf32, #tpu.memory_space<vmem>>, vector<16x32xf32>
      %17 = arith.addf %15, %16 : vector<16x32xf32>
      %cst_16 = arith.constant dense<0.000000e+00> : vector<16xf32>
      %18 = vector.multi_reduction <add>, %17, %cst_16 [1] : vector<16x32xf32> to vector<16xf32>
      %19 = vector.shape_cast %18 : vector<16xf32> to vector<16x1xf32>
      %cst_17 = arith.constant 3.200000e+01 : f32
      %20 = vector.broadcast %cst_17 : f32 to vector<16x1xf32>
      %21 = arith.divf %19, %20 : vector<16x1xf32>
      %22 = vector.broadcast %21 : vector<16x1xf32> to vector<16x32xf32>
      %23 = arith.subf %17, %22 : vector<16x32xf32>
      %24 = arith.mulf %23, %23 : vector<16x32xf32>
      %cst_18 = arith.constant dense<0.000000e+00> : vector<16xf32>
      %25 = vector.multi_reduction <add>, %24, %cst_18 [1] : vector<16x32xf32> to vector<16xf32>
      %26 = vector.shape_cast %25 : vector<16xf32> to vector<16x1xf32>
      %cst_19 = arith.constant 3.200000e+01 : f32
      %27 = vector.broadcast %cst_19 : f32 to vector<16x1xf32>
      %28 = arith.divf %26, %27 : vector<16x1xf32>
      %cst_20 = arith.constant 9.99999996E-13 : f32
      %29 = vector.broadcast %cst_20 : f32 to vector<16x1xf32>
      %30 = arith.addf %28, %29 : vector<16x1xf32>
      %31 = math.rsqrt %30 : vector<16x1xf32>
      %32 = vector.broadcast %31 : vector<16x1xf32> to vector<16x32xf32>
      %33 = arith.mulf %23, %32 : vector<16x32xf32>
      %c0_21 = arith.constant 0 : index
      %c0_22 = arith.constant 0 : index
      %34 = vector.load %arg6[%c0_21, %c0_22] : memref<1x32xf32, #tpu.memory_space<vmem>>, vector<1x32xf32>
      %35 = vector.broadcast %34 : vector<1x32xf32> to vector<16x32xf32>
      %36 = arith.mulf %33, %35 : vector<16x32xf32>
      %c0_23 = arith.constant 0 : index
      %c0_24 = arith.constant 0 : index
      %37 = vector.load %arg7[%c0_23, %c0_24] : memref<1x32xf32, #tpu.memory_space<vmem>>, vector<1x32xf32>
      %38 = vector.broadcast %37 : vector<1x32xf32> to vector<16x32xf32>
      %39 = arith.addf %36, %38 : vector<16x32xf32>
      %c0_25 = arith.constant 0 : index
      %c0_26 = arith.constant 0 : index
      %40 = vector.load %arg8[%c0_25, %c0_26] : memref<16x32xf32, #tpu.memory_space<vmem>>, vector<16x32xf32>
      tpu.vector_store %arg8[%c0_25, %c0_26], %39 {strides = array<i32>} : memref<16x32xf32, #tpu.memory_space<vmem>>, vector<16x32xf32>,
    } else {
    }
    return
  }
  func.func @transform_0(%arg0: i32, %arg1: i32) -> (i32, i32) {
    %c0_i32 = arith.constant 0 : i32
    return %arg0, %arg1 : i32, i32
  }
  func.func @transform_1(%arg0: i32, %arg1: i32) -> (i32, i32) {
    %c0_i32 = arith.constant 0 : i32
    %c0_i32_0 = arith.constant 0 : i32
    return %arg1, %c0_i32 : i32, i32
  }
  func.func @transform_2(%arg0: i32, %arg1: i32) -> (i32, i32) {
    %c0_i32 = arith.constant 0 : i32
    %c0_i32_0 = arith.constant 0 : i32
    %c0_i32_1 = arith.constant 0 : i32
    return %c0_i32, %c0_i32_0 : i32, i32
  }
  func.func @transform_3(%arg0: i32, %arg1: i32) -> (i32, i32) {
    %c0_i32 = arith.constant 0 : i32
    %c0_i32_0 = arith.constant 0 : i32
    return %arg0, %c0_i32 : i32, i32
  }
  func.func @transform_4(%arg0: i32, %arg1: i32) -> (i32, i32) {
    %c0_i32 = arith.constant 0 : i32
    %c0_i32_0 = arith.constant 0 : i32
    %c0_i32_1 = arith.constant 0 : i32
    return %c0_i32, %c0_i32_0 : i32, i32
  }
  func.func @transform_5(%arg0: i32, %arg1: i32) -> (i32, i32) {
    %c0_i32 = arith.constant 0 : i32
    %c0_i32_0 = arith.constant 0 : i32
    %c0_i32_1 = arith.constant 0 : i32
    return %c0_i32, %c0_i32_0 : i32, i32
  }
  func.func @transform_6(%arg0: i32, %arg1: i32) -> (i32, i32) {
    %c0_i32 = arith.constant 0 : i32
    %c0_i32_0 = arith.constant 0 : i32
    return %arg0, %c0_i32 : i32, i32
  }
}

module attributes {stable_mosaic.version = 11 : i64} {
  func.func @_linear_kernel(%arg0: i32, %arg1: i32, %arg2: i32, %arg3: memref<16x32xf32, #tpu.memory_space<vmem>>, %arg4: memref<32x64xf32, #tpu.memory_space<vmem>>, %arg5: memref<1x64xf32, #tpu.memory_space<vmem>>, %arg6: memref<16x64xf32, #tpu.memory_space<vmem>>, %arg7: memref<16x64xf32, #tpu.memory_space<vmem>>) attributes {dimension_semantics = [#tpu.dimension_semantics<parallel>, #tpu.dimension_semantics<parallel>, #tpu.dimension_semantics<arbitrary>], iteration_bounds = array<i64: 1, 1, 1>, scalar_prefetch = 0 : i64, scratch_operands = 1 : i64, tpu.core_type = #tpu.core_type<tc>, window_params = [{transform_indices = @transform_0, window_bounds = array<i64: 16, 32>}, {transform_indices = @transform_1, window_bounds = array<i64: 32, 64>}, {transform_indices = @transform_2, window_bounds = array<i64: 1, 64>}, {transform_indices = @transform_3, window_bounds = array<i64: 16, 64>}]} {
    %c0_i32 = arith.constant 0 : i32
    %0 = arith.cmpi eq, %arg2, %c0_i32 : i32
    %1 = arith.extui %0 : i1 to i32
    %c0_i32_0 = arith.constant 0 : i32
    %2 = arith.cmpi ne, %1, %c0_i32_0 : i32
    scf.if %2 {
      %cst_10 = arith.constant 0.000000e+00 : f32
      %12 = vector.broadcast %cst_10 : f32 to vector<16x64xf32>
      %c0_11 = arith.constant 0 : index
      %c0_12 = arith.constant 0 : index
      %13 = vector.load %arg7[%c0_11, %c0_12] : memref<16x64xf32, #tpu.memory_space<vmem>>, vector<16x64xf32>
      tpu.vector_store %arg7[%c0_11, %c0_12], %12 {strides = array<i32>} : memref<16x64xf32, #tpu.memory_space<vmem>>, vector<16x64xf32>,
    } else {
    }
    %c0 = arith.constant 0 : index
    %c0_1 = arith.constant 0 : index
    %3 = vector.load %arg7[%c0, %c0_1] : memref<16x64xf32, #tpu.memory_space<vmem>>, vector<16x64xf32>
    %c0_2 = arith.constant 0 : index
    %c0_3 = arith.constant 0 : index
    %4 = vector.load %arg3[%c0_2, %c0_3] : memref<16x32xf32, #tpu.memory_space<vmem>>, vector<16x32xf32>
    %c0_4 = arith.constant 0 : index
    %c0_5 = arith.constant 0 : index
    %5 = vector.load %arg4[%c0_4, %c0_5] : memref<32x64xf32, #tpu.memory_space<vmem>>, vector<32x64xf32>
    %cst = arith.constant dense<0.000000e+00> : vector<16x64xf32>
    %6 = tpu.matmul %4, %5, %cst {dimension_numbers = #tpu.dot_dimension_numbers<[1], [0], [0], [1], [0, 0, 1, 1], [], []>} : vector<16x32xf32>, vector<32x64xf32>, vector<16x64xf32> -> vector<16x64xf32>
    %7 = arith.addf %3, %6 : vector<16x64xf32>
    %c0_6 = arith.constant 0 : index
    %c0_7 = arith.constant 0 : index
    %8 = vector.load %arg7[%c0_6, %c0_7] : memref<16x64xf32, #tpu.memory_space<vmem>>, vector<16x64xf32>
    tpu.vector_store %arg7[%c0_6, %c0_7], %7 {strides = array<i32>} : memref<16x64xf32, #tpu.memory_space<vmem>>, vector<16x64xf32>,
    %c0_i32_8 = arith.constant 0 : i32
    %9 = arith.cmpi eq, %arg2, %c0_i32_8 : i32
    %10 = arith.extui %9 : i1 to i32
    %c0_i32_9 = arith.constant 0 : i32
    %11 = arith.cmpi ne, %10, %c0_i32_9 : i32
    scf.if %11 {
      %c0_10 = arith.constant 0 : index
      %c0_11 = arith.constant 0 : index
      %12 = vector.load %arg7[%c0_10, %c0_11] : memref<16x64xf32, #tpu.memory_space<vmem>>, vector<16x64xf32>
      %c0_12 = arith.constant 0 : index
      %c0_13 = arith.constant 0 : index
      %13 = vector.load %arg5[%c0_12, %c0_13] : memref<1x64xf32, #tpu.memory_space<vmem>>, vector<1x64xf32>
      %14 = vector.broadcast %13 : vector<1x64xf32> to vector<16x64xf32>
      %15 = arith.addf %12, %14 : vector<16x64xf32>
      %cst_14 = arith.constant 5.000000e-01 : f32
      %16 = vector.broadcast %cst_14 : f32 to vector<16x64xf32>
      %17 = arith.mulf %16, %15 : vector<16x64xf32>
      %cst_15 = arith.constant 4.471500e-02 : f32
      %18 = vector.broadcast %cst_15 : f32 to vector<16x64xf32>
      %19 = arith.mulf %18, %15 : vector<16x64xf32>
      %20 = arith.mulf %19, %15 : vector<16x64xf32>
      %21 = arith.mulf %20, %15 : vector<16x64xf32>
      %22 = arith.addf %15, %21 : vector<16x64xf32>
      %cst_16 = arith.constant 0.797884583 : f32
      %23 = vector.broadcast %cst_16 : f32 to vector<16x64xf32>
      %24 = arith.mulf %23, %22 : vector<16x64xf32>
      %25 = math.tanh %24 : vector<16x64xf32>
      %cst_17 = arith.constant 1.000000e+00 : f32
      %26 = vector.broadcast %cst_17 : f32 to vector<16x64xf32>
      %27 = arith.addf %26, %25 : vector<16x64xf32>
      %28 = arith.mulf %17, %27 : vector<16x64xf32>
      %c0_18 = arith.constant 0 : index
      %c0_19 = arith.constant 0 : index
      %29 = vector.load %arg6[%c0_18, %c0_19] : memref<16x64xf32, #tpu.memory_space<vmem>>, vector<16x64xf32>
      tpu.vector_store %arg6[%c0_18, %c0_19], %28 {strides = array<i32>} : memref<16x64xf32, #tpu.memory_space<vmem>>, vector<16x64xf32>,
    } else {
    }
    return
  }
  func.func @transform_0(%arg0: i32, %arg1: i32, %arg2: i32) -> (i32, i32) {
    %c0_i32 = arith.constant 0 : i32
    return %arg0, %arg2 : i32, i32
  }
  func.func @transform_1(%arg0: i32, %arg1: i32, %arg2: i32) -> (i32, i32) {
    %c0_i32 = arith.constant 0 : i32
    return %arg2, %arg1 : i32, i32
  }
  func.func @transform_2(%arg0: i32, %arg1: i32, %arg2: i32) -> (i32, i32) {
    %c0_i32 = arith.constant 0 : i32
    %c0_i32_0 = arith.constant 0 : i32
    return %c0_i32, %arg1 : i32, i32
  }
  func.func @transform_3(%arg0: i32, %arg1: i32, %arg2: i32) -> (i32, i32) {
    %c0_i32 = arith.constant 0 : i32
    return %arg0, %arg1 : i32, i32
  }
}

module attributes {stable_mosaic.version = 11 : i64} {
  func.func @_linear_res_ln_kernel(%arg0: i32, %arg1: i32, %arg2: memref<16x64xf32, #tpu.memory_space<vmem>>, %arg3: memref<64x32xf32, #tpu.memory_space<vmem>>, %arg4: memref<1x32xf32, #tpu.memory_space<vmem>>, %arg5: memref<16x32xf32, #tpu.memory_space<vmem>>, %arg6: memref<1x32xf32, #tpu.memory_space<vmem>>, %arg7: memref<1x32xf32, #tpu.memory_space<vmem>>, %arg8: memref<16x32xf32, #tpu.memory_space<vmem>>, %arg9: memref<16x32xf32, #tpu.memory_space<vmem>>) attributes {dimension_semantics = [#tpu.dimension_semantics<parallel>, #tpu.dimension_semantics<arbitrary>], iteration_bounds = array<i64: 1, 1>, scalar_prefetch = 0 : i64, scratch_operands = 1 : i64, tpu.core_type = #tpu.core_type<tc>, window_params = [{transform_indices = @transform_0, window_bounds = array<i64: 16, 64>}, {transform_indices = @transform_1, window_bounds = array<i64: 64, 32>}, {pipeline_mode = #tpu.pipeline_mode<synchronous>, transform_indices = @transform_2, window_bounds = array<i64: 1, 32>}, {transform_indices = @transform_3, window_bounds = array<i64: 16, 32>}, {pipeline_mode = #tpu.pipeline_mode<synchronous>, transform_indices = @transform_4, window_bounds = array<i64: 1, 32>}, {pipeline_mode = #tpu.pipeline_mode<synchronous>, transform_indices = @transform_5, window_bounds = array<i64: 1, 32>}, {transform_indices = @transform_6, window_bounds = array<i64: 16, 32>}]} {
    %c0_i32 = arith.constant 0 : i32
    %0 = arith.cmpi eq, %arg1, %c0_i32 : i32
    %1 = arith.extui %0 : i1 to i32
    %c0_i32_0 = arith.constant 0 : i32
    %2 = arith.cmpi ne, %1, %c0_i32_0 : i32
    scf.if %2 {
      %cst_10 = arith.constant 0.000000e+00 : f32
      %12 = vector.broadcast %cst_10 : f32 to vector<16x32xf32>
      %c0_11 = arith.constant 0 : index
      %c0_12 = arith.constant 0 : index
      %13 = vector.load %arg9[%c0_11, %c0_12] : memref<16x32xf32, #tpu.memory_space<vmem>>, vector<16x32xf32>
      tpu.vector_store %arg9[%c0_11, %c0_12], %12 {strides = array<i32>} : memref<16x32xf32, #tpu.memory_space<vmem>>, vector<16x32xf32>,
    } else {
    }
    %c0 = arith.constant 0 : index
    %c0_1 = arith.constant 0 : index
    %3 = vector.load %arg9[%c0, %c0_1] : memref<16x32xf32, #tpu.memory_space<vmem>>, vector<16x32xf32>
    %c0_2 = arith.constant 0 : index
    %c0_3 = arith.constant 0 : index
    %4 = vector.load %arg2[%c0_2, %c0_3] : memref<16x64xf32, #tpu.memory_space<vmem>>, vector<16x64xf32>
    %c0_4 = arith.constant 0 : index
    %c0_5 = arith.constant 0 : index
    %5 = vector.load %arg3[%c0_4, %c0_5] : memref<64x32xf32, #tpu.memory_space<vmem>>, vector<64x32xf32>
    %cst = arith.constant dense<0.000000e+00> : vector<16x32xf32>
    %6 = tpu.matmul %4, %5, %cst {dimension_numbers = #tpu.dot_dimension_numbers<[1], [0], [0], [1], [0, 0, 1, 1], [], []>} : vector<16x64xf32>, vector<64x32xf32>, vector<16x32xf32> -> vector<16x32xf32>
    %7 = arith.addf %3, %6 : vector<16x32xf32>
    %c0_6 = arith.constant 0 : index
    %c0_7 = arith.constant 0 : index
    %8 = vector.load %arg9[%c0_6, %c0_7] : memref<16x32xf32, #tpu.memory_space<vmem>>, vector<16x32xf32>
    tpu.vector_store %arg9[%c0_6, %c0_7], %7 {strides = array<i32>} : memref<16x32xf32, #tpu.memory_space<vmem>>, vector<16x32xf32>,
    %c0_i32_8 = arith.constant 0 : i32
    %9 = arith.cmpi eq, %arg1, %c0_i32_8 : i32
    %10 = arith.extui %9 : i1 to i32
    %c0_i32_9 = arith.constant 0 : i32
    %11 = arith.cmpi ne, %10, %c0_i32_9 : i32
    scf.if %11 {
      %c0_10 = arith.constant 0 : index
      %c0_11 = arith.constant 0 : index
      %12 = vector.load %arg9[%c0_10, %c0_11] : memref<16x32xf32, #tpu.memory_space<vmem>>, vector<16x32xf32>
      %c0_12 = arith.constant 0 : index
      %c0_13 = arith.constant 0 : index
      %13 = vector.load %arg4[%c0_12, %c0_13] : memref<1x32xf32, #tpu.memory_space<vmem>>, vector<1x32xf32>
      %14 = vector.broadcast %13 : vector<1x32xf32> to vector<16x32xf32>
      %15 = arith.addf %12, %14 : vector<16x32xf32>
      %c0_14 = arith.constant 0 : index
      %c0_15 = arith.constant 0 : index
      %16 = vector.load %arg5[%c0_14, %c0_15] : memref<16x32xf32, #tpu.memory_space<vmem>>, vector<16x32xf32>
      %17 = arith.addf %15, %16 : vector<16x32xf32>
      %cst_16 = arith.constant dense<0.000000e+00> : vector<16xf32>
      %18 = vector.multi_reduction <add>, %17, %cst_16 [1] : vector<16x32xf32> to vector<16xf32>
      %19 = vector.shape_cast %18 : vector<16xf32> to vector<16x1xf32>
      %cst_17 = arith.constant 3.200000e+01 : f32
      %20 = vector.broadcast %cst_17 : f32 to vector<16x1xf32>
      %21 = arith.divf %19, %20 : vector<16x1xf32>
      %22 = vector.broadcast %21 : vector<16x1xf32> to vector<16x32xf32>
      %23 = arith.subf %17, %22 : vector<16x32xf32>
      %24 = arith.mulf %23, %23 : vector<16x32xf32>
      %cst_18 = arith.constant dense<0.000000e+00> : vector<16xf32>
      %25 = vector.multi_reduction <add>, %24, %cst_18 [1] : vector<16x32xf32> to vector<16xf32>
      %26 = vector.shape_cast %25 : vector<16xf32> to vector<16x1xf32>
      %cst_19 = arith.constant 3.200000e+01 : f32
      %27 = vector.broadcast %cst_19 : f32 to vector<16x1xf32>
      %28 = arith.divf %26, %27 : vector<16x1xf32>
      %cst_20 = arith.constant 9.99999996E-13 : f32
      %29 = vector.broadcast %cst_20 : f32 to vector<16x1xf32>
      %30 = arith.addf %28, %29 : vector<16x1xf32>
      %31 = math.rsqrt %30 : vector<16x1xf32>
      %32 = vector.broadcast %31 : vector<16x1xf32> to vector<16x32xf32>
      %33 = arith.mulf %23, %32 : vector<16x32xf32>
      %c0_21 = arith.constant 0 : index
      %c0_22 = arith.constant 0 : index
      %34 = vector.load %arg6[%c0_21, %c0_22] : memref<1x32xf32, #tpu.memory_space<vmem>>, vector<1x32xf32>
      %35 = vector.broadcast %34 : vector<1x32xf32> to vector<16x32xf32>
      %36 = arith.mulf %33, %35 : vector<16x32xf32>
      %c0_23 = arith.constant 0 : index
      %c0_24 = arith.constant 0 : index
      %37 = vector.load %arg7[%c0_23, %c0_24] : memref<1x32xf32, #tpu.memory_space<vmem>>, vector<1x32xf32>
      %38 = vector.broadcast %37 : vector<1x32xf32> to vector<16x32xf32>
      %39 = arith.addf %36, %38 : vector<16x32xf32>
      %c0_25 = arith.constant 0 : index
      %c0_26 = arith.constant 0 : index
      %40 = vector.load %arg8[%c0_25, %c0_26] : memref<16x32xf32, #tpu.memory_space<vmem>>, vector<16x32xf32>
      tpu.vector_store %arg8[%c0_25, %c0_26], %39 {strides = array<i32>} : memref<16x32xf32, #tpu.memory_space<vmem>>, vector<16x32xf32>,
    } else {
    }
    return
  }
  func.func @transform_0(%arg0: i32, %arg1: i32) -> (i32, i32) {
    %c0_i32 = arith.constant 0 : i32
    return %arg0, %arg1 : i32, i32
  }
  func.func @transform_1(%arg0: i32, %arg1: i32) -> (i32, i32) {
    %c0_i32 = arith.constant 0 : i32
    %c0_i32_0 = arith.constant 0 : i32
    return %arg1, %c0_i32 : i32, i32
  }
  func.func @transform_2(%arg0: i32, %arg1: i32) -> (i32, i32) {
    %c0_i32 = arith.constant 0 : i32
    %c0_i32_0 = arith.constant 0 : i32
    %c0_i32_1 = arith.constant 0 : i32
    return %c0_i32, %c0_i32_0 : i32, i32
  }
  func.func @transform_3(%arg0: i32, %arg1: i32) -> (i32, i32) {
    %c0_i32 = arith.constant 0 : i32
    %c0_i32_0 = arith.constant 0 : i32
    return %arg0, %c0_i32 : i32, i32
  }
  func.func @transform_4(%arg0: i32, %arg1: i32) -> (i32, i32) {
    %c0_i32 = arith.constant 0 : i32
    %c0_i32_0 = arith.constant 0 : i32
    %c0_i32_1 = arith.constant 0 : i32
    return %c0_i32, %c0_i32_0 : i32, i32
  }
  func.func @transform_5(%arg0: i32, %arg1: i32) -> (i32, i32) {
    %c0_i32 = arith.constant 0 : i32
    %c0_i32_0 = arith.constant 0 : i32
    %c0_i32_1 = arith.constant 0 : i32
    return %c0_i32, %c0_i32_0 : i32, i32
  }
  func.func @transform_6(%arg0: i32, %arg1: i32) -> (i32, i32) {
    %c0_i32 = arith.constant 0 : i32
    %c0_i32_0 = arith.constant 0 : i32
    return %arg0, %c0_i32 : i32, i32
  }
}

module attributes {stable_mosaic.version = 11 : i64} {
  func.func @_linear_kernel(%arg0: i32, %arg1: i32, %arg2: i32, %arg3: memref<2x32xf32, #tpu.memory_space<vmem>>, %arg4: memref<32x32xf32, #tpu.memory_space<vmem>>, %arg5: memref<1x32xf32, #tpu.memory_space<vmem>>, %arg6: memref<2x32xf32, #tpu.memory_space<vmem>>, %arg7: memref<2x32xf32, #tpu.memory_space<vmem>>) attributes {dimension_semantics = [#tpu.dimension_semantics<parallel>, #tpu.dimension_semantics<parallel>, #tpu.dimension_semantics<arbitrary>], iteration_bounds = array<i64: 1, 1, 1>, scalar_prefetch = 0 : i64, scratch_operands = 1 : i64, tpu.core_type = #tpu.core_type<tc>, window_params = [{transform_indices = @transform_0, window_bounds = array<i64: 2, 32>}, {transform_indices = @transform_1, window_bounds = array<i64: 32, 32>}, {transform_indices = @transform_2, window_bounds = array<i64: 1, 32>}, {transform_indices = @transform_3, window_bounds = array<i64: 2, 32>}]} {
    %c0_i32 = arith.constant 0 : i32
    %0 = arith.cmpi eq, %arg2, %c0_i32 : i32
    %1 = arith.extui %0 : i1 to i32
    %c0_i32_0 = arith.constant 0 : i32
    %2 = arith.cmpi ne, %1, %c0_i32_0 : i32
    scf.if %2 {
      %cst_10 = arith.constant 0.000000e+00 : f32
      %12 = vector.broadcast %cst_10 : f32 to vector<2x32xf32>
      %c0_11 = arith.constant 0 : index
      %c0_12 = arith.constant 0 : index
      %13 = vector.load %arg7[%c0_11, %c0_12] : memref<2x32xf32, #tpu.memory_space<vmem>>, vector<2x32xf32>
      tpu.vector_store %arg7[%c0_11, %c0_12], %12 {strides = array<i32>} : memref<2x32xf32, #tpu.memory_space<vmem>>, vector<2x32xf32>,
    } else {
    }
    %c0 = arith.constant 0 : index
    %c0_1 = arith.constant 0 : index
    %3 = vector.load %arg7[%c0, %c0_1] : memref<2x32xf32, #tpu.memory_space<vmem>>, vector<2x32xf32>
    %c0_2 = arith.constant 0 : index
    %c0_3 = arith.constant 0 : index
    %4 = vector.load %arg3[%c0_2, %c0_3] : memref<2x32xf32, #tpu.memory_space<vmem>>, vector<2x32xf32>
    %c0_4 = arith.constant 0 : index
    %c0_5 = arith.constant 0 : index
    %5 = vector.load %arg4[%c0_4, %c0_5] : memref<32x32xf32, #tpu.memory_space<vmem>>, vector<32x32xf32>
    %cst = arith.constant dense<0.000000e+00> : vector<2x32xf32>
    %6 = tpu.matmul %4, %5, %cst {dimension_numbers = #tpu.dot_dimension_numbers<[1], [0], [0], [1], [0, 0, 1, 1], [], []>} : vector<2x32xf32>, vector<32x32xf32>, vector<2x32xf32> -> vector<2x32xf32>
    %7 = arith.addf %3, %6 : vector<2x32xf32>
    %c0_6 = arith.constant 0 : index
    %c0_7 = arith.constant 0 : index
    %8 = vector.load %arg7[%c0_6, %c0_7] : memref<2x32xf32, #tpu.memory_space<vmem>>, vector<2x32xf32>
    tpu.vector_store %arg7[%c0_6, %c0_7], %7 {strides = array<i32>} : memref<2x32xf32, #tpu.memory_space<vmem>>, vector<2x32xf32>,
    %c0_i32_8 = arith.constant 0 : i32
    %9 = arith.cmpi eq, %arg2, %c0_i32_8 : i32
    %10 = arith.extui %9 : i1 to i32
    %c0_i32_9 = arith.constant 0 : i32
    %11 = arith.cmpi ne, %10, %c0_i32_9 : i32
    scf.if %11 {
      %c0_10 = arith.constant 0 : index
      %c0_11 = arith.constant 0 : index
      %12 = vector.load %arg7[%c0_10, %c0_11] : memref<2x32xf32, #tpu.memory_space<vmem>>, vector<2x32xf32>
      %c0_12 = arith.constant 0 : index
      %c0_13 = arith.constant 0 : index
      %13 = vector.load %arg5[%c0_12, %c0_13] : memref<1x32xf32, #tpu.memory_space<vmem>>, vector<1x32xf32>
      %14 = vector.broadcast %13 : vector<1x32xf32> to vector<2x32xf32>
      %15 = arith.addf %12, %14 : vector<2x32xf32>
      %16 = math.tanh %15 : vector<2x32xf32>
      %c0_14 = arith.constant 0 : index
      %c0_15 = arith.constant 0 : index
      %17 = vector.load %arg6[%c0_14, %c0_15] : memref<2x32xf32, #tpu.memory_space<vmem>>, vector<2x32xf32>
      tpu.vector_store %arg6[%c0_14, %c0_15], %16 {strides = array<i32>} : memref<2x32xf32, #tpu.memory_space<vmem>>, vector<2x32xf32>,
    } else {
    }
    return
  }
  func.func @transform_0(%arg0: i32, %arg1: i32, %arg2: i32) -> (i32, i32) {
    %c0_i32 = arith.constant 0 : i32
    return %arg0, %arg2 : i32, i32
  }
  func.func @transform_1(%arg0: i32, %arg1: i32, %arg2: i32) -> (i32, i32) {
    %c0_i32 = arith.constant 0 : i32
    return %arg2, %arg1 : i32, i32
  }
  func.func @transform_2(%arg0: i32, %arg1: i32, %arg2: i32) -> (i32, i32) {
    %c0_i32 = arith.constant 0 : i32
    %c0_i32_0 = arith.constant 0 : i32
    return %c0_i32, %arg1 : i32, i32
  }
  func.func @transform_3(%arg0: i32, %arg1: i32, %arg2: i32) -> (i32, i32) {
    %c0_i32 = arith.constant 0 : i32
    return %arg0, %arg1 : i32, i32
  }
}

</mosaic_0001>

<llo_original>
// kernel: _lambda_.12
$region0: #{_lambda_.12}
  #allocation0 [shape = 'u32[]', space=smem, size = 0x4, offset = 0x4, fixed_abs, tag = 'smem constant byte address 0x4 - core index']
  #allocation1 [shape = 'u32[144,128]{1,0:T(1,128)}', space=vmem, size = 0x12000, scoped, tag = 'internal scratch']
  %s0 = inlined_call_operand.vmem [shape: f32[16,32], index: 0, kind: input, shape index: {}]
  %s1 = inlined_call_operand.vmem [shape: f32[1,32], index: 1, kind: input, shape index: {}]
  %s2 = inlined_call_operand.vmem [shape: f32[1,32], index: 2, kind: input, shape index: {}]
  %s3 = inlined_call_operand.vmem [shape: f32[16,32], index: 3, kind: output, shape index: {}]
  %s4 = sld [smem:[#allocation0]]
  $region22: #{_lambda_.12} parent=0
    _
  %s6 = ssub.s32 1, %s4
  %s7 = scalar_select 0, %s6, %s4
  // Predicated region
  $region2: #{_lambda_.12} parent=0 // pred_check
    _
  $region3: #{_lambda_.12} parent=0 // pred_check_branch
    %9 = sbr.rel (0) target = $region5
  $region4: #{_lambda_.12} parent=0 // pred_region
    _
  $region5: #{_lambda_.12} parent=0 // pred_fallthru
    _
  // Predicated region
  $region6: #{_lambda_.12} parent=0 // pred_check
    _
  $region7: #{_lambda_.12} parent=0 // pred_check_branch
    %11 = sbr.rel (0) target = $region9
  $region8: #{_lambda_.12} parent=0 // pred_region
    _
  $region9: #{_lambda_.12} parent=0 // pred_fallthru
    _
  // Predicated region
  $region10: #{_lambda_.12} parent=0 // pred_check
    _
  $region11: #{_lambda_.12} parent=0 // pred_check_branch
    %13 = sbr.rel (0) target = $region13
  $region12: #{_lambda_.12} parent=0 // pred_region
    _
  $region13: #{_lambda_.12} parent=0 // pred_fallthru
    _
  %v14 = vld [vmem:[%s0] sm:$0xff]
  %v15 = vld [vmem:[%s0 + $0x8] sm:$0xff]
  %vm16 = vcmask 261120
  %v17 = vsel %vm16, %v14, 0.0
  %18 = vadd.xlane.f32.xlu0 %v17
  %v19 = vpop.xlane.xlu0 %18
  %v20 = vsel %vm16, %v15, 0.0
  %21 = vadd.xlane.f32.xlu0 %v20
  %v22 = vpop.xlane.xlu0 %21
  %v23 = vrcp.pop 32.0
  %v24 = vmul.f32 %v19, %v23
  %v25 = vmul.f32 %v22, %v23
  %v26 = vsub.f32 %v14, %v24
  %v27 = vsub.f32 %v15, %v25
  %v28 = vmul.f32 %v26, %v26
  %v29 = vmul.f32 %v27, %v27
  %v30 = vsel %vm16, %v28, 0.0
  %31 = vadd.xlane.f32.xlu0 %v30
  %v32 = vpop.xlane.xlu0 %31
  %v33 = vsel %vm16, %v29, 0.0
  %34 = vadd.xlane.f32.xlu0 %v33
  %v35 = vpop.xlane.xlu0 %34
  %v36 = vmul.f32 %v32, %v23
  %v37 = vmul.f32 %v35, %v23
  %v38 = vadd.f32 %v36, 1e-12
  %v39 = vadd.f32 %v37, 1e-12
  %v40 = vrsqrt.pop %v38
  %v41 = vrsqrt.pop %v39
  %v42 = vmul.f32 %v26, %v40
  %v43 = vmul.f32 %v27, %v41
  %v44 = vld [vmem:[%s1] sm:$0x1]
  %v46 = vlaneseq
  %v47 = vshrl.u32 %v46, 7
  %v48 = vsub.s32 0, %v47
  %v49 = vrot.slane %v44, %v48
  %v51 = vmul.f32 %v42, %v49
  %v52 = vmul.f32 %v43, %v49
  %v53 = vld [vmem:[%s2] sm:$0x1]
  %v55 = vlaneseq
  %v56 = vshrl.u32 %v55, 7
  %v57 = vsub.s32 0, %v56
  %v58 = vrot.slane %v53, %v57
  %v60 = vadd.f32 %v51, %v58
  %v61 = vadd.f32 %v52, %v58
  %62 = vst.msk [vmem:[%s3] sm:$0xff] %vm16, %v60
  %63 = vst.msk [vmem:[%s3 + $0x8] sm:$0xff] %vm16, %v61
  // Predicated region
  $region14: #{_lambda_.12} parent=0 // pred_check
    _
  $region15: #{_lambda_.12} parent=0 // pred_check_branch
    %65 = sbr.rel (0) target = $region17
  $region16: #{_lambda_.12} parent=0 // pred_region
    _
  $region17: #{_lambda_.12} parent=0 // pred_fallthru
    _
  // Predicated region
  $region18: #{_lambda_.12} parent=0 // pred_check
    _
  $region19: #{_lambda_.12} parent=0 // pred_check_branch
    %67 = sbr.rel (0) target = $region21
  $region20: #{_lambda_.12} parent=0 // pred_region
    _
  $region21: #{_lambda_.12} parent=0 // pred_fallthru
    _

// kernel: _lambda_.13
$region0: #{_lambda_.13}
  #allocation0 [shape = 'u32[]', space=smem, size = 0x4, offset = 0x4, fixed_abs, tag = 'smem constant byte address 0x4 - core index']
  #allocation1 [shape = 'u32[144,128]{1,0:T(1,128)}', space=vmem, size = 0x12000, scoped, tag = 'internal scratch']
  #allocation2 [shape = 'f32[16,96]{1,0:T(8,128)}', space=vmem, size = 0x2000, scoped, tag = 'scratch operand']
  %s0 = inlined_call_operand.vmem [shape: f32[16,32], index: 0, kind: input, shape index: {}]
  %s1 = inlined_call_operand.vmem [shape: f32[32,96], index: 1, kind: input, shape index: {}]
  %s2 = inlined_call_operand.vmem [shape: f32[1,96], index: 2, kind: input, shape index: {}]
  %s3 = inlined_call_operand.vmem [shape: f32[16,96], index: 3, kind: output, shape index: {}]
  %s4 = sld [smem:[#allocation0]]
  $region30: #{_lambda_.13} parent=0
    _
  %s6 = ssub.s32 1, %s4
  %s7 = scalar_select 0, %s6, %s4
  // Predicated region
  $region2: #{_lambda_.13} parent=0 // pred_check
    _
  $region3: #{_lambda_.13} parent=0 // pred_check_branch
    %9 = sbr.rel (0) target = $region5
  $region4: #{_lambda_.13} parent=0 // pred_region
    _
  $region5: #{_lambda_.13} parent=0 // pred_fallthru
    _
  // Predicated region
  $region6: #{_lambda_.13} parent=0 // pred_check
    _
  $region7: #{_lambda_.13} parent=0 // pred_check_branch
    %11 = sbr.rel (0) target = $region9
  $region8: #{_lambda_.13} parent=0 // pred_region
    _
  $region9: #{_lambda_.13} parent=0 // pred_fallthru
    _
  // Predicated region
  $region10: #{_lambda_.13} parent=0 // pred_check
    _
  $region11: #{_lambda_.13} parent=0 // pred_check_branch
    %13 = sbr.rel (0) target = $region13
  $region12: #{_lambda_.13} parent=0 // pred_region
    _
  $region13: #{_lambda_.13} parent=0 // pred_fallthru
    _
  %p14 = scmp.eq.s32.totalorder 0, 0
  // Predicated region
  $region14: #{_lambda_.13} parent=0 // pred_check
    %p15 = pneg %p14
  $region15: #{_lambda_.13} parent=0 // pred_check_branch
    %17 = sbr.rel (%p15) target = $region17
  $region16: #{_lambda_.13} parent=0 // pred_region
    %vm18 = vcmask 785408
    %19 = vst.msk [vmem:[#allocation2] sm:$0xff] %vm18, 0.0
    %20 = vst.msk [vmem:[#allocation2 + $0x8] sm:$0xff] %vm18, 0.0
  $region17: #{_lambda_.13} parent=0 // pred_fallthru
    _
  %v21 = vld [vmem:[#allocation2] sm:$0xff]
  %v22 = vld [vmem:[#allocation2 + $0x8] sm:$0xff]
  %v23 = vld [vmem:[%s0] sm:$0xff]
  %v24 = vld [vmem:[%s0 + $0x8] sm:$0xff]
  %v25 = vld [vmem:[%s1] sm:$0xff]
  %v26 = vld [vmem:[%s1 + $0x8] sm:$0xff]
  %v27 = vld [vmem:[%s1 + $0x10] sm:$0xff]
  %v28 = vld [vmem:[%s1 + $0x18] sm:$0xff]
  %vm29 = vcmask 261120
  %v31 = vsel %vm29, %v23, 0
  %v34 = vsel %vm29, %v24, 0
  %36 = vmatprep.subr.mxu0 0.0
  %37 = vmatpush1.msra.mxu0 %v25
  %38 = vmatprep.subr.mxu0 0.0
  %39 = vmatpush1.msra.mxu0 %v26
  %40 = vmatprep.subr.mxu0 0.0
  %41 = vmatpush1.msra.mxu0 %v27
  %42 = vmatprep.subr.mxu0 0.0
  %43 = vmatpush1.msra.mxu0 %v28
  %44 = vmatprep.subr.mxu0 0.0
  %45 = vmatpush1.msra.mxu0 0.0
  %46 = vmatprep.subr.mxu0 0.0
  %47 = vmatpush1.msra.mxu0 0.0
  %48 = vmatprep.subr.mxu0 0.0
  %49 = vmatpush1.msra.mxu0 0.0
  %50 = vmatprep.subr.mxu0 0.0
  %51 = vmatpush1.msra.mxu0 0.0
  %52 = vmatprep.subr.mxu0 0.0
  %53 = vmatpush1.msra.mxu0 0.0
  %54 = vmatprep.subr.mxu0 0.0
  %55 = vmatpush1.msra.mxu0 0.0
  %56 = vmatprep.subr.mxu0 0.0
  %57 = vmatpush1.msra.mxu0 0.0
  %58 = vmatprep.subr.mxu0 0.0
  %59 = vmatpush1.msra.mxu0 0.0
  %60 = vmatprep.subr.mxu0 0.0
  %61 = vmatpush1.msra.mxu0 0.0
  %62 = vmatprep.subr.mxu0 0.0
  %63 = vmatpush1.msra.mxu0 0.0
  %64 = vmatprep.subr.mxu0 0.0
  %65 = vmatpush1.msra.mxu0 0.0
  %66 = vmatprep.subr.mxu0 0.0
  %67 = vmatpush1.msra.mxu0 0.0
  %68 = vmatprep.subr.mxu0 0.0
  %69 = vmatpush1.msra.mxu0 0.0
  %70 = vmatprep.subr.mxu0 0.0
  %71 = vmatpush1.msra.mxu0 0.0
  %72 = vmatprep.subr.mxu0 0.0
  %73 = vmatpush1.msra.mxu0 0.0
  %74 = vmatprep.subr.mxu0 0.0
  %75 = vmatpush1.msra.mxu0 0.0
  %76 = vmatprep.subr.mxu0 0.0
  %77 = vmatpush1.msra.mxu0 0.0
  %78 = vmatprep.subr.mxu0 0.0
  %79 = vmatpush1.msra.mxu0 0.0
  %80 = vmatprep.subr.mxu0 0.0
  %81 = vmatpush1.msra.mxu0 0.0
  %82 = vmatprep.subr.mxu0 0.0
  %83 = vmatpush1.msra.mxu0 0.0
  %84 = vmatprep.subr.mxu0 0.0
  %85 = vmatpush1.msra.mxu0 0.0
  %86 = vmatprep.subr.mxu0 0.0
  %87 = vmatpush1.msra.mxu0 0.0
  %88 = vmatprep.subr.mxu0 0.0
  %89 = vmatpush1.msra.mxu0 0.0
  %90 = vmatprep.subr.mxu0 0.0
  %91 = vmatpush1.msra.mxu0 0.0
  %92 = vmatprep.subr.mxu0 0.0
  %93 = vmatpush1.msra.mxu0 0.0
  %94 = vmatprep.subr.mxu0 0.0
  %95 = vmatpush1.msra.mxu0 0.0
  %96 = vmatprep.subr.mxu0 0.0
  %97 = vmatpush1.msra.mxu0 0.0
  %98 = vmatprep.subr.mxu0 0.0
  %99 = vmatpush1.msra.mxu0 0.0
  %100 = vmatprep.mubr.f32.mxu0 0.0
  %101 = vmatmul.mubr.f32.gmra.mrb[0].mxu0 %v31
  %v102 = vpop.f32.mrb[0].mxu0
  %v103 = vadd.f32 0.0, %v102
  %v104 = vpop.f32.mrb[0].mxu0
  %105 = vmatprep.mubr.f32.mxu0 0.0
  %106 = vmatmul.mubr.f32.gmra.mrb[0].mxu0 %v34
  %v107 = vpop.f32.mrb[0].mxu0
  %v108 = vadd.f32 0.0, %v107
  %v109 = vpop.f32.mrb[0].mxu0
  %110 = vdwg.mxu0
  %v111 = vadd.f32 %v21, %v103
  %v112 = vadd.f32 %v22, %v108
  %vm113 = vcmask 785408
  %114 = vst.msk [vmem:[#allocation2] sm:$0xff] %vm113, %v111
  %115 = vst.msk [vmem:[#allocation2 + $0x8] sm:$0xff] %vm113, %v112
  // Predicated region
  $region18: #{_lambda_.13} parent=0 // pred_check
    %p116 = pneg %p14
  $region19: #{_lambda_.13} parent=0 // pred_check_branch
    %118 = sbr.rel (%p116) target = $region21
  $region20: #{_lambda_.13} parent=0 // pred_region
    %v119 = vld [vmem:[#allocation2] sm:$0xff]
    %v120 = vld [vmem:[#allocation2 + $0x8] sm:$0xff]
    %v121 = vld [vmem:[%s2] sm:$0x1]
    %v123 = vlaneseq
    %v124 = vshrl.u32 %v123, 7
    %v125 = vsub.s32 0, %v124
    %v126 = vrot.slane %v121, %v125
    %v128 = vadd.f32 %v119, %v126
    %v129 = vadd.f32 %v120, %v126
    %130 = vst.msk [vmem:[%s3] sm:$0xff] %vm113, %v128
    %131 = vst.msk [vmem:[%s3 + $0x8] sm:$0xff] %vm113, %v129
  $region21: #{_lambda_.13} parent=0 // pred_fallthru
    _
  // Predicated region
  $region22: #{_lambda_.13} parent=0 // pred_check
    _
  $region23: #{_lambda_.13} parent=0 // pred_check_branch
    %133 = sbr.rel (0) target = $region25
  $region24: #{_lambda_.13} parent=0 // pred_region
    _
  $region25: #{_lambda_.13} parent=0 // pred_fallthru
    _
  // Predicated region
  $region26: #{_lambda_.13} parent=0 // pred_check
    _
  $region27: #{_lambda_.13} parent=0 // pred_check_branch
    %135 = sbr.rel (0) target = $region29
  $region28: #{_lambda_.13} parent=0 // pred_region
    _
  $region29: #{_lambda_.13} parent=0 // pred_fallthru
    _

// kernel: _lambda_.14
$region0: #{_lambda_.14}
  #allocation0 [shape = 'u32[]', space=smem, size = 0x4, offset = 0x4, fixed_abs, tag = 'smem constant byte address 0x4 - core index']
  #allocation1 [shape = 'u32[144,128]{1,0:T(1,128)}', space=vmem, size = 0x12000, scoped, tag = 'internal scratch']
  %s0 = inlined_call_operand.vmem [shape: f32[2,4,8,8], index: 0, kind: input, shape index: {}]
  %s1 = inlined_call_operand.vmem [shape: f32[2,4,8,8], index: 1, kind: input, shape index: {}]
  %s2 = inlined_call_operand.vmem [shape: f32[2,4,8,8], index: 2, kind: input, shape index: {}]
  %s3 = inlined_call_operand.vmem [shape: f32[2,1,1,8], index: 3, kind: input, shape index: {}]
  %s4 = inlined_call_operand.vmem [shape: f32[2,4,8,8], index: 4, kind: output, shape index: {}]
  %s5 = sld [smem:[#allocation0]]
  $region49: #{_lambda_.14} parent=0
    _
  %s7 = ssub.s32 1, %s5
  %s8 = scalar_select 0, %s7, %s5
  loop: start=0, step=1, limit=4
  $region2: #{_lambda_.14} parent=0 // loop_pre_header
    _
  $region3: #{_lambda_.14} parent=0 // loop_header
    %s10 = sphi 0, %s14
    %p11 = scmp.ge.s32.totalorder %s10, 4
    %s17 = sphi 0, %s29
    %s18 = sphi 0, %s25
    %s19 = sphi 0, %s17
    %s20 = sphi 0, %s18
    %s21 = sphi 0, %s19
    %s22 = sphi 0, %s20
    %s34 = sphi 0, %s36
    %s37 = sphi 0, %s34
    %s38 = sphi 0, %s37
    %s54 = sphi 0, %s38
    %s62 = sphi 0, %s64
    %s65 = sphi 0, %s62
    %s66 = sphi 0, %s65
    %s82 = sphi 0, %s66
    %s90 = sphi 0, %s92
    %s93 = sphi 0, %s90
    %s94 = sphi 0, %s93
    %s110 = sphi 0, %s94
    %s116 = sphi 0, %s118
    %s119 = sphi 0, %s116
    %s120 = sphi 0, %s119
    %s136 = sphi 0, %s120
    %s144 = sphi 0, %s146
    %s147 = sphi 0, %s144
    %s148 = sphi 0, %s147
    %s164 = sphi 0, %s148
  $region4: #{_lambda_.14} parent=0 // loop_header_branch
    %13 = sbr.rel (%p11) target = $region8
  $region5: #{_lambda_.14} parent=0 // loop_body
    %s15 = ssub.s32 %s10, 1
    %s16 = ssub.s32 %s10, 2
    %s23 = sadd.s32 1, %s18
    %p24 = scmp.ge.s32.totalorder %s23, 1
    %s25 = scalar_select %p24, 0, %s23
    %s26 = sadd.s32 1, %s17
    %s27 = scalar_select %p24, %s26, %s17
    %p28 = scmp.ge.s32.totalorder %s27, 2
    %s29 = scalar_select %p28, 0, %s27
    %s30 = ssub.s32 %s17, %s29
    %s31 = ssub.s32 %s18, %s25
    %s32 = sor.u32 %s30, %s31
    %p33 = scmp.eq.s32.totalorder %s32, 0
    %s35 = sadd.s32 %s34, 1
    %s36 = scalar_select %p33, %s34, %s35
    %p39 = pneg %p33
    %p40 = scmp.eq.s32.totalorder %s10, 1
    %p41 = por %p39, %p40
    %p42 = scmp.ne.s32.totalorder %s34, %s37
    %p43 = scmp.eq.s32.totalorder %s10, 0
    %p44 = por %p42, %p43
    %p45 = scmp.ne.s32.totalorder %s34, %s37
    %p46 = scmp.eq.s32.totalorder %s15, 1
    %p47 = por %p45, %p46
    %p48 = scmp.ne.s32.totalorder %s37, %s38
    %p49 = scmp.eq.s32.totalorder %s15, 0
    %p50 = por %p48, %p49
    %p51 = scmp.ne.s32.totalorder %s37, %s38
    %p52 = scmp.eq.s32.totalorder %s16, 1
    %p53 = por %p51, %p52
    %p55 = scmp.ne.s32.totalorder %s38, %s54
    %p56 = scmp.eq.s32.totalorder %s16, 0
    %p57 = por %p55, %p56
    %s58 = ssub.s32 %s17, %s29
    %s59 = ssub.s32 %s18, %s25
    %s60 = sor.u32 %s58, %s59
    %p61 = scmp.eq.s32.totalorder %s60, 0
    %s63 = sadd.s32 %s62, 1
    %s64 = scalar_select %p61, %s62, %s63
    %p67 = pneg %p61
    %p68 = scmp.eq.s32.totalorder %s10, 1
    %p69 = por %p67, %p68
    %p70 = scmp.ne.s32.totalorder %s62, %s65
    %p71 = scmp.eq.s32.totalorder %s10, 0
    %p72 = por %p70, %p71
    %p73 = scmp.ne.s32.totalorder %s62, %s65
    %p74 = scmp.eq.s32.totalorder %s15, 1
    %p75 = por %p73, %p74
    %p76 = scmp.ne.s32.totalorder %s65, %s66
    %p77 = scmp.eq.s32.totalorder %s15, 0
    %p78 = por %p76, %p77
    %p79 = scmp.ne.s32.totalorder %s65, %s66
    %p80 = scmp.eq.s32.totalorder %s16, 1
    %p81 = por %p79, %p80
    %p83 = scmp.ne.s32.totalorder %s66, %s82
    %p84 = scmp.eq.s32.totalorder %s16, 0
    %p85 = por %p83, %p84
    %s86 = ssub.s32 %s17, %s29
    %s87 = ssub.s32 %s18, %s25
    %s88 = sor.u32 %s86, %s87
    %p89 = scmp.eq.s32.totalorder %s88, 0
    %s91 = sadd.s32 %s90, 1
    %s92 = scalar_select %p89, %s90, %s91
    %p95 = pneg %p89
    %p96 = scmp.eq.s32.totalorder %s10, 1
    %p97 = por %p95, %p96
    %p98 = scmp.ne.s32.totalorder %s90, %s93
    %p99 = scmp.eq.s32.totalorder %s10, 0
    %p100 = por %p98, %p99
    %p101 = scmp.ne.s32.totalorder %s90, %s93
    %p102 = scmp.eq.s32.totalorder %s15, 1
    %p103 = por %p101, %p102
    %p104 = scmp.ne.s32.totalorder %s93, %s94
    %p105 = scmp.eq.s32.totalorder %s15, 0
    %p106 = por %p104, %p105
    %p107 = scmp.ne.s32.totalorder %s93, %s94
    %p108 = scmp.eq.s32.totalorder %s16, 1
    %p109 = por %p107, %p108
    %p111 = scmp.ne.s32.totalorder %s94, %s110
    %p112 = scmp.eq.s32.totalorder %s16, 0
    %p113 = por %p111, %p112
    %s114 = ssub.s32 %s17, %s29
    %p115 = scmp.eq.s32.totalorder %s114, 0
    %s117 = sadd.s32 %s116, 1
    %s118 = scalar_select %p115, %s116, %s117
    %p121 = pneg %p115
    %p122 = scmp.eq.s32.totalorder %s10, 1
    %p123 = por %p121, %p122
    %p124 = scmp.ne.s32.totalorder %s116, %s119
    %p125 = scmp.eq.s32.totalorder %s10, 0
    %p126 = por %p124, %p125
    %p127 = scmp.ne.s32.totalorder %s116, %s119
    %p128 = scmp.eq.s32.totalorder %s15, 1
    %p129 = por %p127, %p128
    %p130 = scmp.ne.s32.totalorder %s119, %s120
    %p131 = scmp.eq.s32.totalorder %s15, 0
    %p132 = por %p130, %p131
    %p133 = scmp.ne.s32.totalorder %s119, %s120
    %p134 = scmp.eq.s32.totalorder %s16, 1
    %p135 = por %p133, %p134
    %p137 = scmp.ne.s32.totalorder %s120, %s136
    %p138 = scmp.eq.s32.totalorder %s16, 0
    %p139 = por %p137, %p138
    %s140 = ssub.s32 %s17, %s29
    %s141 = ssub.s32 %s18, %s25
    %s142 = sor.u32 %s140, %s141
    %p143 = scmp.eq.s32.totalorder %s142, 0
    %s145 = sadd.s32 %s144, 1
    %s146 = scalar_select %p143, %s144, %s145
    %p149 = pneg %p143
    %p150 = scmp.eq.s32.totalorder %s10, 1
    %p151 = por %p149, %p150
    %p152 = scmp.ne.s32.totalorder %s144, %s147
    %p153 = scmp.eq.s32.totalorder %s10, 0
    %p154 = por %p152, %p153
    %p155 = scmp.ne.s32.totalorder %s144, %s147
    %p156 = scmp.eq.s32.totalorder %s15, 1
    %p157 = por %p155, %p156
    %p158 = scmp.ne.s32.totalorder %s147, %s148
    %p159 = scmp.eq.s32.totalorder %s15, 0
    %p160 = por %p158, %p159
    %p161 = scmp.ne.s32.totalorder %s147, %s148
    %p162 = scmp.eq.s32.totalorder %s16, 1
    %p163 = por %p161, %p162
    %p165 = scmp.ne.s32.totalorder %s148, %s164
    %p166 = scmp.eq.s32.totalorder %s16, 0
    %p167 = por %p165, %p166
    %p168 = scmp.le.s32.totalorder 1, %s10
    %p169 = scmp.lt.s32.totalorder %s10, 3
    %p170 = pnand %p168, %p169
    %p171 = pneg %p170
    // Predicated region
    $region9: #{_lambda_.14} parent=5 // pred_check
      _
    $region10: #{_lambda_.14} parent=5 // pred_check_branch
      %173 = sbr.rel (%p170) target = $region12
    $region11: #{_lambda_.14} parent=5 // pred_region
      %s174 = ssub.s32 %s10, 1
    $region12: #{_lambda_.14} parent=5 // pred_fallthru
      _
    %p175 = scmp.lt.s32.totalorder %s10, 2
    // Predicated region
    $region13: #{_lambda_.14} parent=5 // pred_check
      %p176 = pneg %p175
    $region14: #{_lambda_.14} parent=5 // pred_check_branch
      %178 = sbr.rel (%p176) target = $region16
    $region15: #{_lambda_.14} parent=5 // pred_region
      // Predicated region
      $region17: #{_lambda_.14} parent=15 // pred_check
        %p179 = pneg %p44
      $region18: #{_lambda_.14} parent=15 // pred_check_branch
        %181 = sbr.rel (%p179) target = $region20
      $region19: #{_lambda_.14} parent=15 // pred_region
        %s182 = smul.u32 4, %s18
        %p183 = scmp.lt.s32.totalorder %s17, 1
        %s184 = scalar_select %p183, %s17, 1
        %p185 = scmp.lt.s32.totalorder %s182, 3
        %s186 = scalar_select %p185, %s182, 3
        %s187 = smul.addr %s184, 4
        %s188 = sadd.s32 %s186, %s187
        %s189 = smul.addr %s188, 8
        %s190 = scalar_lea.vmem %s0, %s189
        %s191 = smul.u32 4, %s18
      $region20: #{_lambda_.14} parent=15 // pred_fallthru
        _
      // Predicated region
      $region21: #{_lambda_.14} parent=15 // pred_check
        %p192 = pneg %p72
      $region22: #{_lambda_.14} parent=15 // pred_check_branch
        %194 = sbr.rel (%p192) target = $region24
      $region23: #{_lambda_.14} parent=15 // pred_region
        %s195 = smul.u32 4, %s18
        %p196 = scmp.lt.s32.totalorder %s17, 1
        %s197 = scalar_select %p196, %s17, 1
        %p198 = scmp.lt.s32.totalorder %s195, 3
        %s199 = scalar_select %p198, %s195, 3
        %s200 = smul.addr %s197, 4
        %s201 = sadd.s32 %s199, %s200
        %s202 = smul.addr %s201, 8
        %s203 = scalar_lea.vmem %s1, %s202
        %s204 = smul.u32 4, %s18
      $region24: #{_lambda_.14} parent=15 // pred_fallthru
        _
      // Predicated region
      $region25: #{_lambda_.14} parent=15 // pred_check
        %p205 = pneg %p100
      $region26: #{_lambda_.14} parent=15 // pred_check_branch
        %207 = sbr.rel (%p205) target = $region28
      $region27: #{_lambda_.14} parent=15 // pred_region
        %s208 = smul.u32 4, %s18
        %p209 = scmp.lt.s32.totalorder %s17, 1
        %s210 = scalar_select %p209, %s17, 1
        %p211 = scmp.lt.s32.totalorder %s208, 3
        %s212 = scalar_select %p211, %s208, 3
        %s213 = smul.addr %s210, 4
        %s214 = sadd.s32 %s212, %s213
        %s215 = smul.addr %s214, 8
        %s216 = scalar_lea.vmem %s2, %s215
        %s217 = smul.u32 4, %s18
      $region28: #{_lambda_.14} parent=15 // pred_fallthru
        _
      // Predicated region
      $region29: #{_lambda_.14} parent=15 // pred_check
        %p218 = pneg %p126
      $region30: #{_lambda_.14} parent=15 // pred_check_branch
        %220 = sbr.rel (%p218) target = $region32
      $region31: #{_lambda_.14} parent=15 // pred_region
        %p221 = scmp.lt.s32.totalorder %s17, 1
        %s222 = scalar_select %p221, %s17, 1
        %s223 = scalar_lea.vmem %s3, %s222
      $region32: #{_lambda_.14} parent=15 // pred_fallthru
        _
    $region16: #{_lambda_.14} parent=5 // pred_fallthru
      _
    %p224 = scmp.le.s32.totalorder 1, %s10
    %p225 = scmp.lt.s32.totalorder %s10, 3
    %p226 = pnand %p224, %p225
    %p227 = pneg %p226
    // Predicated region
    $region33: #{_lambda_.14} parent=5 // pred_check
      _
    $region34: #{_lambda_.14} parent=5 // pred_check_branch
      %229 = sbr.rel (%p226) target = $region36
    $region35: #{_lambda_.14} parent=5 // pred_region
      %s230 = ssub.s32 %s10, 1
      %s231 = smul.u32 4, %s20
      %p232 = scmp.lt.s32.totalorder %s19, 1
      %s233 = scalar_select %p232, %s19, 1
      %p234 = scmp.lt.s32.totalorder %s231, 3
      %s235 = scalar_select %p234, %s231, 3
      %s236 = smul.addr %s233, 4
      %s237 = sadd.s32 %s235, %s236
      %s238 = smul.addr %s237, 8
      %s239 = scalar_lea.vmem %s0, %s238
      %p240 = pneg %p50
      %p241 = pneg %p47
      %s242 = smul.u32 4, %s20
      %p243 = scmp.lt.s32.totalorder %s19, 1
      %s244 = scalar_select %p243, %s19, 1
      %p245 = scmp.lt.s32.totalorder %s242, 3
      %s246 = scalar_select %p245, %s242, 3
      %s247 = smul.addr %s244, 4
      %s248 = sadd.s32 %s246, %s247
      %s249 = smul.addr %s248, 8
      %s250 = scalar_lea.vmem %s1, %s249
      %p251 = pneg %p78
      %p252 = pneg %p75
      %s253 = smul.u32 4, %s20
      %p254 = scmp.lt.s32.totalorder %s19, 1
      %s255 = scalar_select %p254, %s19, 1
      %p256 = scmp.lt.s32.totalorder %s253, 3
      %s257 = scalar_select %p256, %s253, 3
      %s258 = smul.addr %s255, 4
      %s259 = sadd.s32 %s257, %s258
      %s260 = smul.addr %s259, 8
      %s261 = scalar_lea.vmem %s2, %s260
      %p262 = pneg %p106
      %p263 = pneg %p103
      %p264 = scmp.lt.s32.totalorder %s19, 1
      %s265 = scalar_select %p264, %s19, 1
      %s266 = scalar_lea.vmem %s3, %s265
      %p267 = pneg %p132
      %p268 = pneg %p129
      %p269 = pneg %p160
      %p270 = pneg %p157
      %s271 = smul.u32 4, %s20
      %p272 = scmp.lt.s32.totalorder %s19, 1
      %s273 = scalar_select %p272, %s19, 1
      %p274 = scmp.lt.s32.totalorder %s271, 3
      %s275 = scalar_select %p274, %s271, 3
      %s276 = smul.addr %s273, 4
      %s277 = sadd.s32 %s275, %s276
      %s278 = smul.addr %s277, 8
      %s279 = scalar_lea.vmem %s4, %s278
      %s280 = smul.u32 4, %s20
      %p281 = scmp.lt.s32.totalorder %s19, 1
      %s282 = scalar_select %p281, %s19, 1
      %p283 = scmp.lt.s32.totalorder %s280, 3
      %s284 = scalar_select %p283, %s280, 3
      %s285 = smul.addr %s282, 4
      %s286 = sadd.s32 %s284, %s285
      %s287 = smul.addr %s286, 8
      %s288 = scalar_lea.vmem %s0, %s287
      %s289 = smul.u32 4, %s20
      %s290 = smul.u32 4, %s20
      %p291 = scmp.lt.s32.totalorder %s19, 1
      %s292 = scalar_select %p291, %s19, 1
      %p293 = scmp.lt.s32.totalorder %s290, 3
      %s294 = scalar_select %p293, %s290, 3
      %s295 = smul.addr %s292, 4
      %s296 = sadd.s32 %s294, %s295
      %s297 = smul.addr %s296, 8
      %s298 = scalar_lea.vmem %s1, %s297
      %s299 = smul.u32 4, %s20
      %s300 = smul.u32 4, %s20
      %p301 = scmp.lt.s32.totalorder %s19, 1
      %s302 = scalar_select %p301, %s19, 1
      %p303 = scmp.lt.s32.totalorder %s300, 3
      %s304 = scalar_select %p303, %s300, 3
      %s305 = smul.addr %s302, 4
      %s306 = sadd.s32 %s304, %s305
      %s307 = smul.addr %s306, 8
      %s308 = scalar_lea.vmem %s2, %s307
      %s309 = smul.u32 4, %s20
      %p310 = scmp.lt.s32.totalorder %s19, 1
      %s311 = scalar_select %p310, %s19, 1
      %s312 = scalar_lea.vmem %s3, %s311
      %s313 = smul.u32 4, %s20
      %p314 = scmp.lt.s32.totalorder %s19, 1
      %s315 = scalar_select %p314, %s19, 1
      %p316 = scmp.lt.s32.totalorder %s313, 3
      %s317 = scalar_select %p316, %s313, 3
      %s318 = smul.addr %s315, 4
      %s319 = sadd.s32 %s317, %s318
      %s320 = smul.addr %s319, 8
      %s321 = scalar_lea.vmem %s4, %s320
      %s322 = smul.u32 4, %s20
      %v323 = vld [vmem:[%s288] sm:$0xff]
      %v324 = vld [vmem:[%s288 + $0x8] sm:$0xff]
      %v325 = vld [vmem:[%s288 + $0x10] sm:$0xff]
      %v326 = vld [vmem:[%s288 + $0x18] sm:$0xff]
      %v327 = vld [vmem:[%s298] sm:$0xff]
      %v328 = vld [vmem:[%s298 + $0x8] sm:$0xff]
      %v329 = vld [vmem:[%s298 + $0x10] sm:$0xff]
      %v330 = vld [vmem:[%s298 + $0x18] sm:$0xff]
      %v331 = vld [vmem:[%s308] sm:$0xff]
      %v332 = vld [vmem:[%s308 + $0x8] sm:$0xff]
      %v333 = vld [vmem:[%s308 + $0x10] sm:$0xff]
      %v334 = vld [vmem:[%s308 + $0x18] sm:$0xff]
      %v335 = vld [vmem:[%s312] sm:$0x1]
      %v337 = vlaneseq
      %v338 = vshrl.u32 %v337, 7
      %v339 = vsub.s32 0, %v338
      %v340 = vrot.slane %v335, %v339
      %vm342 = vcmask 64512
      %v344 = vsel %vm342, %v323, 0
      %v347 = vsel %vm342, %v327, 0
      %349 = vmatprep.subr.mxu0 0.0
      %350 = vmatpush1.xpose.msra.mxu0 %v347
      %351 = vmatprep.subr.mxu0 0.0
      %352 = vmatpush1.xpose.msra.mxu0 0.0
      %353 = vmatprep.subr.mxu0 0.0
      %354 = vmatpush1.xpose.msra.mxu0 0.0
      %355 = vmatprep.subr.mxu0 0.0
      %356 = vmatpush1.xpose.msra.mxu0 0.0
      %357 = vmatprep.subr.mxu0 0.0
      %358 = vmatpush1.xpose.msra.mxu0 0.0
      %359 = vmatprep.subr.mxu0 0.0
      %360 = vmatpush1.xpose.msra.mxu0 0.0
      %361 = vmatprep.subr.mxu0 0.0
      %362 = vmatpush1.xpose.msra.mxu0 0.0
      %363 = vmatprep.subr.mxu0 0.0
      %364 = vmatpush1.xpose.msra.mxu0 0.0
      %365 = vmatprep.subr.mxu0 0.0
      %366 = vmatpush1.xpose.msra.mxu0 0.0
      %367 = vmatprep.subr.mxu0 0.0
      %368 = vmatpush1.xpose.msra.mxu0 0.0
      %369 = vmatprep.subr.mxu0 0.0
      %370 = vmatpush1.xpose.msra.mxu0 0.0
      %371 = vmatprep.subr.mxu0 0.0
      %372 = vmatpush1.xpose.msra.mxu0 0.0
      %373 = vmatprep.subr.mxu0 0.0
      %374 = vmatpush1.xpose.msra.mxu0 0.0
      %375 = vmatprep.subr.mxu0 0.0
      %376 = vmatpush1.xpose.msra.mxu0 0.0
      %377 = vmatprep.subr.mxu0 0.0
      %378 = vmatpush1.xpose.msra.mxu0 0.0
      %379 = vmatprep.subr.mxu0 0.0
      %380 = vmatpush1.xpose.msra.mxu0 0.0
      %381 = vmatprep.subr.mxu0 0.0
      %382 = vmatpush1.xpose.msra.mxu0 0.0
      %383 = vmatprep.subr.mxu0 0.0
      %384 = vmatpush1.xpose.msra.mxu0 0.0
      %385 = vmatprep.subr.mxu0 0.0
      %386 = vmatpush1.xpose.msra.mxu0 0.0
      %387 = vmatprep.subr.mxu0 0.0
      %388 = vmatpush1.xpose.msra.mxu0 0.0
      %389 = vmatprep.subr.mxu0 0.0
      %390 = vmatpush1.xpose.msra.mxu0 0.0
      %391 = vmatprep.subr.mxu0 0.0
      %392 = vmatpush1.xpose.msra.mxu0 0.0
      %393 = vmatprep.subr.mxu0 0.0
      %394 = vmatpush1.xpose.msra.mxu0 0.0
      %395 = vmatprep.subr.mxu0 0.0
      %396 = vmatpush1.xpose.msra.mxu0 0.0
      %397 = vmatprep.subr.mxu0 0.0
      %398 = vmatpush1.xpose.msra.mxu0 0.0
      %399 = vmatprep.subr.mxu0 0.0
      %400 = vmatpush1.xpose.msra.mxu0 0.0
      %401 = vmatprep.subr.mxu0 0.0
      %402 = vmatpush1.xpose.msra.mxu0 0.0
      %403 = vmatprep.subr.mxu0 0.0
      %404 = vmatpush1.xpose.msra.mxu0 0.0
      %405 = vmatprep.subr.mxu0 0.0
      %406 = vmatpush1.xpose.msra.mxu0 0.0
      %407 = vmatprep.subr.mxu0 0.0
      %408 = vmatpush1.xpose.msra.mxu0 0.0
      %409 = vmatprep.subr.mxu0 0.0
      %410 = vmatpush1.xpose.msra.mxu0 0.0
      %411 = vmatprep.subr.mxu0 0.0
      %412 = vmatpush1.xpose.msra.mxu0 0.0
      %413 = vmatprep.mubr.f32.mxu0 0.0
      %414 = vmatmul.mubr.f32.gmra.mrb[0].mxu0 %v344
      %v415 = vpop.f32.mrb[0].mxu0
      %v416 = vadd.f32 %v340, %v415
      %v417 = vpop.f32.mrb[0].mxu0
      %418 = vdwg.mxu0
      %v420 = vsel %vm342, %v324, 0
      %v423 = vsel %vm342, %v328, 0
      %425 = vmatprep.subr.mxu0 0.0
      %426 = vmatpush1.xpose.msra.mxu0 %v423
      %427 = vmatprep.subr.mxu0 0.0
      %428 = vmatpush1.xpose.msra.mxu0 0.0
      %429 = vmatprep.subr.mxu0 0.0
      %430 = vmatpush1.xpose.msra.mxu0 0.0
      %431 = vmatprep.subr.mxu0 0.0
      %432 = vmatpush1.xpose.msra.mxu0 0.0
      %433 = vmatprep.subr.mxu0 0.0
      %434 = vmatpush1.xpose.msra.mxu0 0.0
      %435 = vmatprep.subr.mxu0 0.0
      %436 = vmatpush1.xpose.msra.mxu0 0.0
      %437 = vmatprep.subr.mxu0 0.0
      %438 = vmatpush1.xpose.msra.mxu0 0.0
      %439 = vmatprep.subr.mxu0 0.0
      %440 = vmatpush1.xpose.msra.mxu0 0.0
      %441 = vmatprep.subr.mxu0 0.0
      %442 = vmatpush1.xpose.msra.mxu0 0.0
      %443 = vmatprep.subr.mxu0 0.0
      %444 = vmatpush1.xpose.msra.mxu0 0.0
      %445 = vmatprep.subr.mxu0 0.0
      %446 = vmatpush1.xpose.msra.mxu0 0.0
      %447 = vmatprep.subr.mxu0 0.0
      %448 = vmatpush1.xpose.msra.mxu0 0.0
      %449 = vmatprep.subr.mxu0 0.0
      %450 = vmatpush1.xpose.msra.mxu0 0.0
      %451 = vmatprep.subr.mxu0 0.0
      %452 = vmatpush1.xpose.msra.mxu0 0.0
      %453 = vmatprep.subr.mxu0 0.0
      %454 = vmatpush1.xpose.msra.mxu0 0.0
      %455 = vmatprep.subr.mxu0 0.0
      %456 = vmatpush1.xpose.msra.mxu0 0.0
      %457 = vmatprep.subr.mxu0 0.0
      %458 = vmatpush1.xpose.msra.mxu0 0.0
      %459 = vmatprep.subr.mxu0 0.0
      %460 = vmatpush1.xpose.msra.mxu0 0.0
      %461 = vmatprep.subr.mxu0 0.0
      %462 = vmatpush1.xpose.msra.mxu0 0.0
      %463 = vmatprep.subr.mxu0 0.0
      %464 = vmatpush1.xpose.msra.mxu0 0.0
      %465 = vmatprep.subr.mxu0 0.0
      %466 = vmatpush1.xpose.msra.mxu0 0.0
      %467 = vmatprep.subr.mxu0 0.0
      %468 = vmatpush1.xpose.msra.mxu0 0.0
      %469 = vmatprep.subr.mxu0 0.0
      %470 = vmatpush1.xpose.msra.mxu0 0.0
      %471 = vmatprep.subr.mxu0 0.0
      %472 = vmatpush1.xpose.msra.mxu0 0.0
      %473 = vmatprep.subr.mxu0 0.0
      %474 = vmatpush1.xpose.msra.mxu0 0.0
      %475 = vmatprep.subr.mxu0 0.0
      %476 = vmatpush1.xpose.msra.mxu0 0.0
      %477 = vmatprep.subr.mxu0 0.0
      %478 = vmatpush1.xpose.msra.mxu0 0.0
      %479 = vmatprep.subr.mxu0 0.0
      %480 = vmatpush1.xpose.msra.mxu0 0.0
      %481 = vmatprep.subr.mxu0 0.0
      %482 = vmatpush1.xpose.msra.mxu0 0.0
      %483 = vmatprep.subr.mxu0 0.0
      %484 = vmatpush1.xpose.msra.mxu0 0.0
      %485 = vmatprep.subr.mxu0 0.0
      %486 = vmatpush1.xpose.msra.mxu0 0.0
      %487 = vmatprep.subr.mxu0 0.0
      %488 = vmatpush1.xpose.msra.mxu0 0.0
      %489 = vmatprep.mubr.f32.mxu0 0.0
      %490 = vmatmul.mubr.f32.gmra.mrb[0].mxu0 %v420
      %v491 = vpop.f32.mrb[0].mxu0
      %v492 = vadd.f32 %v340, %v491
      %v493 = vpop.f32.mrb[0].mxu0
      %494 = vdwg.mxu0
      %v496 = vsel %vm342, %v325, 0
      %v499 = vsel %vm342, %v329, 0
      %501 = vmatprep.subr.mxu0 0.0
      %502 = vmatpush1.xpose.msra.mxu0 %v499
      %503 = vmatprep.subr.mxu0 0.0
      %504 = vmatpush1.xpose.msra.mxu0 0.0
      %505 = vmatprep.subr.mxu0 0.0
      %506 = vmatpush1.xpose.msra.mxu0 0.0
      %507 = vmatprep.subr.mxu0 0.0
      %508 = vmatpush1.xpose.msra.mxu0 0.0
      %509 = vmatprep.subr.mxu0 0.0
      %510 = vmatpush1.xpose.msra.mxu0 0.0
      %511 = vmatprep.subr.mxu0 0.0
      %512 = vmatpush1.xpose.msra.mxu0 0.0
      %513 = vmatprep.subr.mxu0 0.0
      %514 = vmatpush1.xpose.msra.mxu0 0.0
      %515 = vmatprep.subr.mxu0 0.0
      %516 = vmatpush1.xpose.msra.mxu0 0.0
      %517 = vmatprep.subr.mxu0 0.0
      %518 = vmatpush1.xpose.msra.mxu0 0.0
      %519 = vmatprep.subr.mxu0 0.0
      %520 = vmatpush1.xpose.msra.mxu0 0.0
      %521 = vmatprep.subr.mxu0 0.0
      %522 = vmatpush1.xpose.msra.mxu0 0.0
      %523 = vmatprep.subr.mxu0 0.0
      %524 = vmatpush1.xpose.msra.mxu0 0.0
      %525 = vmatprep.subr.mxu0 0.0
      %526 = vmatpush1.xpose.msra.mxu0 0.0
      %527 = vmatprep.subr.mxu0 0.0
      %528 = vmatpush1.xpose.msra.mxu0 0.0
      %529 = vmatprep.subr.mxu0 0.0
      %530 = vmatpush1.xpose.msra.mxu0 0.0
      %531 = vmatprep.subr.mxu0 0.0
      %532 = vmatpush1.xpose.msra.mxu0 0.0
      %533 = vmatprep.subr.mxu0 0.0
      %534 = vmatpush1.xpose.msra.mxu0 0.0
      %535 = vmatprep.subr.mxu0 0.0
      %536 = vmatpush1.xpose.msra.mxu0 0.0
      %537 = vmatprep.subr.mxu0 0.0
      %538 = vmatpush1.xpose.msra.mxu0 0.0
      %539 = vmatprep.subr.mxu0 0.0
      %540 = vmatpush1.xpose.msra.mxu0 0.0
      %541 = vmatprep.subr.mxu0 0.0
      %542 = vmatpush1.xpose.msra.mxu0 0.0
      %543 = vmatprep.subr.mxu0 0.0
      %544 = vmatpush1.xpose.msra.mxu0 0.0
      %545 = vmatprep.subr.mxu0 0.0
      %546 = vmatpush1.xpose.msra.mxu0 0.0
      %547 = vmatprep.subr.mxu0 0.0
      %548 = vmatpush1.xpose.msra.mxu0 0.0
      %549 = vmatprep.subr.mxu0 0.0
      %550 = vmatpush1.xpose.msra.mxu0 0.0
      %551 = vmatprep.subr.mxu0 0.0
      %552 = vmatpush1.xpose.msra.mxu0 0.0
      %553 = vmatprep.subr.mxu0 0.0
      %554 = vmatpush1.xpose.msra.mxu0 0.0
      %555 = vmatprep.subr.mxu0 0.0
      %556 = vmatpush1.xpose.msra.mxu0 0.0
      %557 = vmatprep.subr.mxu0 0.0
      %558 = vmatpush1.xpose.msra.mxu0 0.0
      %559 = vmatprep.subr.mxu0 0.0
      %560 = vmatpush1.xpose.msra.mxu0 0.0
      %561 = vmatprep.subr.mxu0 0.0
      %562 = vmatpush1.xpose.msra.mxu0 0.0
      %563 = vmatprep.subr.mxu0 0.0
      %564 = vmatpush1.xpose.msra.mxu0 0.0
      %565 = vmatprep.mubr.f32.mxu0 0.0
      %566 = vmatmul.mubr.f32.gmra.mrb[0].mxu0 %v496
      %v567 = vpop.f32.mrb[0].mxu0
      %v568 = vadd.f32 %v340, %v567
      %v569 = vpop.f32.mrb[0].mxu0
      %570 = vdwg.mxu0
      %v572 = vsel %vm342, %v326, 0
      %v575 = vsel %vm342, %v330, 0
      %577 = vmatprep.subr.mxu0 0.0
      %578 = vmatpush1.xpose.msra.mxu0 %v575
      %579 = vmatprep.subr.mxu0 0.0
      %580 = vmatpush1.xpose.msra.mxu0 0.0
      %581 = vmatprep.subr.mxu0 0.0
      %582 = vmatpush1.xpose.msra.mxu0 0.0
      %583 = vmatprep.subr.mxu0 0.0
      %584 = vmatpush1.xpose.msra.mxu0 0.0
      %585 = vmatprep.subr.mxu0 0.0
      %586 = vmatpush1.xpose.msra.mxu0 0.0
      %587 = vmatprep.subr.mxu0 0.0
      %588 = vmatpush1.xpose.msra.mxu0 0.0
      %589 = vmatprep.subr.mxu0 0.0
      %590 = vmatpush1.xpose.msra.mxu0 0.0
      %591 = vmatprep.subr.mxu0 0.0
      %592 = vmatpush1.xpose.msra.mxu0 0.0
      %593 = vmatprep.subr.mxu0 0.0
      %594 = vmatpush1.xpose.msra.mxu0 0.0
      %595 = vmatprep.subr.mxu0 0.0
      %596 = vmatpush1.xpose.msra.mxu0 0.0
      %597 = vmatprep.subr.mxu0 0.0
      %598 = vmatpush1.xpose.msra.mxu0 0.0
      %599 = vmatprep.subr.mxu0 0.0
      %600 = vmatpush1.xpose.msra.mxu0 0.0
      %601 = vmatprep.subr.mxu0 0.0
      %602 = vmatpush1.xpose.msra.mxu0 0.0
      %603 = vmatprep.subr.mxu0 0.0
      %604 = vmatpush1.xpose.msra.mxu0 0.0
      %605 = vmatprep.subr.mxu0 0.0
      %606 = vmatpush1.xpose.msra.mxu0 0.0
      %607 = vmatprep.subr.mxu0 0.0
      %608 = vmatpush1.xpose.msra.mxu0 0.0
      %609 = vmatprep.subr.mxu0 0.0
      %610 = vmatpush1.xpose.msra.mxu0 0.0
      %611 = vmatprep.subr.mxu0 0.0
      %612 = vmatpush1.xpose.msra.mxu0 0.0
      %613 = vmatprep.subr.mxu0 0.0
      %614 = vmatpush1.xpose.msra.mxu0 0.0
      %615 = vmatprep.subr.mxu0 0.0
      %616 = vmatpush1.xpose.msra.mxu0 0.0
      %617 = vmatprep.subr.mxu0 0.0
      %618 = vmatpush1.xpose.msra.mxu0 0.0
      %619 = vmatprep.subr.mxu0 0.0
      %620 = vmatpush1.xpose.msra.mxu0 0.0
      %621 = vmatprep.subr.mxu0 0.0
      %622 = vmatpush1.xpose.msra.mxu0 0.0
      %623 = vmatprep.subr.mxu0 0.0
      %624 = vmatpush1.xpose.msra.mxu0 0.0
      %625 = vmatprep.subr.mxu0 0.0
      %626 = vmatpush1.xpose.msra.mxu0 0.0
      %627 = vmatprep.subr.mxu0 0.0
      %628 = vmatpush1.xpose.msra.mxu0 0.0
      %629 = vmatprep.subr.mxu0 0.0
      %630 = vmatpush1.xpose.msra.mxu0 0.0
      %631 = vmatprep.subr.mxu0 0.0
      %632 = vmatpush1.xpose.msra.mxu0 0.0
      %633 = vmatprep.subr.mxu0 0.0
      %634 = vmatpush1.xpose.msra.mxu0 0.0
      %635 = vmatprep.subr.mxu0 0.0
      %636 = vmatpush1.xpose.msra.mxu0 0.0
      %637 = vmatprep.subr.mxu0 0.0
      %638 = vmatpush1.xpose.msra.mxu0 0.0
      %639 = vmatprep.subr.mxu0 0.0
      %640 = vmatpush1.xpose.msra.mxu0 0.0
      %641 = vmatprep.mubr.f32.mxu0 0.0
      %642 = vmatmul.mubr.f32.gmra.mrb[0].mxu0 %v572
      %v643 = vpop.f32.mrb[0].mxu0
      %v644 = vadd.f32 %v340, %v643
      %v645 = vpop.f32.mrb[0].mxu0
      %646 = vdwg.mxu0
      %v647 = vsel %vm342, %v416, -inf
      %648 = vmax.xlane.f32.xlu0 %v647
      %v649 = vpop.xlane.xlu0 %648
      %v650 = vsel %vm342, %v492, -inf
      %651 = vmax.xlane.f32.xlu0 %v650
      %v652 = vpop.xlane.xlu0 %651
      %v653 = vsel %vm342, %v568, -inf
      %654 = vmax.xlane.f32.xlu0 %v653
      %v655 = vpop.xlane.xlu0 %654
      %v656 = vsel %vm342, %v644, -inf
      %657 = vmax.xlane.f32.xlu0 %v656
      %v658 = vpop.xlane.xlu0 %657
      %v659 = vsub.f32 %v416, %v649
      %v660 = vsub.f32 %v492, %v652
      %v661 = vsub.f32 %v568, %v655
      %v662 = vsub.f32 %v644, %v658
      %v663 = vmul.f32 %v659, 1.442695
      %v664 = vpow.pop %v663
      %v665 = vmul.f32 %v660, 1.442695
      %v666 = vpow.pop %v665
      %v667 = vmul.f32 %v661, 1.442695
      %v668 = vpow.pop %v667
      %v669 = vmul.f32 %v662, 1.442695
      %v670 = vpow.pop %v669
      %v671 = vsel %vm342, %v664, 0.0
      %672 = vadd.xlane.f32.xlu0 %v671
      %v673 = vpop.xlane.xlu0 %672
      %v674 = vsel %vm342, %v666, 0.0
      %675 = vadd.xlane.f32.xlu0 %v674
      %v676 = vpop.xlane.xlu0 %675
      %v677 = vsel %vm342, %v668, 0.0
      %678 = vadd.xlane.f32.xlu0 %v677
      %v679 = vpop.xlane.xlu0 %678
      %v680 = vsel %vm342, %v670, 0.0
      %681 = vadd.xlane.f32.xlu0 %v680
      %v682 = vpop.xlane.xlu0 %681
      %v683 = vrcp.pop %v673
      %v684 = vrcp.pop %v676
      %v685 = vrcp.pop %v679
      %v686 = vrcp.pop %v682
      %v687 = vmul.f32 %v664, %v683
      %v688 = vmul.f32 %v666, %v684
      %v689 = vmul.f32 %v668, %v685
      %v690 = vmul.f32 %v670, %v686
      %v692 = vsel %vm342, %v687, 0
      %694 = vmatprep.subr.mxu0 0.0
      %695 = vmatpush1.msra.mxu0 %v331
      %696 = vmatprep.subr.mxu0 0.0
      %697 = vmatpush1.msra.mxu0 0.0
      %698 = vmatprep.subr.mxu0 0.0
      %699 = vmatpush1.msra.mxu0 0.0
      %700 = vmatprep.subr.mxu0 0.0
      %701 = vmatpush1.msra.mxu0 0.0
      %702 = vmatprep.subr.mxu0 0.0
      %703 = vmatpush1.msra.mxu0 0.0
      %704 = vmatprep.subr.mxu0 0.0
      %705 = vmatpush1.msra.mxu0 0.0
      %706 = vmatprep.subr.mxu0 0.0
      %707 = vmatpush1.msra.mxu0 0.0
      %708 = vmatprep.subr.mxu0 0.0
      %709 = vmatpush1.msra.mxu0 0.0
      %710 = vmatprep.subr.mxu0 0.0
      %711 = vmatpush1.msra.mxu0 0.0
      %712 = vmatprep.subr.mxu0 0.0
      %713 = vmatpush1.msra.mxu0 0.0
      %714 = vmatprep.subr.mxu0 0.0
      %715 = vmatpush1.msra.mxu0 0.0
      %716 = vmatprep.subr.mxu0 0.0
      %717 = vmatpush1.msra.mxu0 0.0
      %718 = vmatprep.subr.mxu0 0.0
      %719 = vmatpush1.msra.mxu0 0.0
      %720 = vmatprep.subr.mxu0 0.0
      %721 = vmatpush1.msra.mxu0 0.0
      %722 = vmatprep.subr.mxu0 0.0
      %723 = vmatpush1.msra.mxu0 0.0
      %724 = vmatprep.subr.mxu0 0.0
      %725 = vmatpush1.msra.mxu0 0.0
      %726 = vmatprep.subr.mxu0 0.0
      %727 = vmatpush1.msra.mxu0 0.0
      %728 = vmatprep.subr.mxu0 0.0
      %729 = vmatpush1.msra.mxu0 0.0
      %730 = vmatprep.subr.mxu0 0.0
      %731 = vmatpush1.msra.mxu0 0.0
      %732 = vmatprep.subr.mxu0 0.0
      %733 = vmatpush1.msra.mxu0 0.0
      %734 = vmatprep.subr.mxu0 0.0
      %735 = vmatpush1.msra.mxu0 0.0
      %736 = vmatprep.subr.mxu0 0.0
      %737 = vmatpush1.msra.mxu0 0.0
      %738 = vmatprep.subr.mxu0 0.0
      %739 = vmatpush1.msra.mxu0 0.0
      %740 = vmatprep.subr.mxu0 0.0
      %741 = vmatpush1.msra.mxu0 0.0
      %742 = vmatprep.subr.mxu0 0.0
      %743 = vmatpush1.msra.mxu0 0.0
      %744 = vmatprep.subr.mxu0 0.0
      %745 = vmatpush1.msra.mxu0 0.0
      %746 = vmatprep.subr.mxu0 0.0
      %747 = vmatpush1.msra.mxu0 0.0
      %748 = vmatprep.subr.mxu0 0.0
      %749 = vmatpush1.msra.mxu0 0.0
      %750 = vmatprep.subr.mxu0 0.0
      %751 = vmatpush1.msra.mxu0 0.0
      %752 = vmatprep.subr.mxu0 0.0
      %753 = vmatpush1.msra.mxu0 0.0
      %754 = vmatprep.subr.mxu0 0.0
      %755 = vmatpush1.msra.mxu0 0.0
      %756 = vmatprep.subr.mxu0 0.0
      %757 = vmatpush1.msra.mxu0 0.0
      %758 = vmatprep.mubr.f32.mxu0 0.0
      %759 = vmatmul.mubr.f32.gmra.mrb[0].mxu0 %v692
      %v760 = vpop.f32.mrb[0].mxu0
      %v761 = vadd.f32 0.0, %v760
      %v762 = vpop.f32.mrb[0].mxu0
      %763 = vdwg.mxu0
      %v765 = vsel %vm342, %v688, 0
      %767 = vmatprep.subr.mxu0 0.0
      %768 = vmatpush1.msra.mxu0 %v332
      %769 = vmatprep.subr.mxu0 0.0
      %770 = vmatpush1.msra.mxu0 0.0
      %771 = vmatprep.subr.mxu0 0.0
      %772 = vmatpush1.msra.mxu0 0.0
      %773 = vmatprep.subr.mxu0 0.0
      %774 = vmatpush1.msra.mxu0 0.0
      %775 = vmatprep.subr.mxu0 0.0
      %776 = vmatpush1.msra.mxu0 0.0
      %777 = vmatprep.subr.mxu0 0.0
      %778 = vmatpush1.msra.mxu0 0.0
      %779 = vmatprep.subr.mxu0 0.0
      %780 = vmatpush1.msra.mxu0 0.0
      %781 = vmatprep.subr.mxu0 0.0
      %782 = vmatpush1.msra.mxu0 0.0
      %783 = vmatprep.subr.mxu0 0.0
      %784 = vmatpush1.msra.mxu0 0.0
      %785 = vmatprep.subr.mxu0 0.0
      %786 = vmatpush1.msra.mxu0 0.0
      %787 = vmatprep.subr.mxu0 0.0
      %788 = vmatpush1.msra.mxu0 0.0
      %789 = vmatprep.subr.mxu0 0.0
      %790 = vmatpush1.msra.mxu0 0.0
      %791 = vmatprep.subr.mxu0 0.0
      %792 = vmatpush1.msra.mxu0 0.0
      %793 = vmatprep.subr.mxu0 0.0
      %794 = vmatpush1.msra.mxu0 0.0
      %795 = vmatprep.subr.mxu0 0.0
      %796 = vmatpush1.msra.mxu0 0.0
      %797 = vmatprep.subr.mxu0 0.0
      %798 = vmatpush1.msra.mxu0 0.0
      %799 = vmatprep.subr.mxu0 0.0
      %800 = vmatpush1.msra.mxu0 0.0
      %801 = vmatprep.subr.mxu0 0.0
      %802 = vmatpush1.msra.mxu0 0.0
      %803 = vmatprep.subr.mxu0 0.0
      %804 = vmatpush1.msra.mxu0 0.0
      %805 = vmatprep.subr.mxu0 0.0
      %806 = vmatpush1.msra.mxu0 0.0
      %807 = vmatprep.subr.mxu0 0.0
      %808 = vmatpush1.msra.mxu0 0.0
      %809 = vmatprep.subr.mxu0 0.0
      %810 = vmatpush1.msra.mxu0 0.0
      %811 = vmatprep.subr.mxu0 0.0
      %812 = vmatpush1.msra.mxu0 0.0
      %813 = vmatprep.subr.mxu0 0.0
      %814 = vmatpush1.msra.mxu0 0.0
      %815 = vmatprep.subr.mxu0 0.0
      %816 = vmatpush1.msra.mxu0 0.0
      %817 = vmatprep.subr.mxu0 0.0
      %818 = vmatpush1.msra.mxu0 0.0
      %819 = vmatprep.subr.mxu0 0.0
      %820 = vmatpush1.msra.mxu0 0.0
      %821 = vmatprep.subr.mxu0 0.0
      %822 = vmatpush1.msra.mxu0 0.0
      %823 = vmatprep.subr.mxu0 0.0
      %824 = vmatpush1.msra.mxu0 0.0
      %825 = vmatprep.subr.mxu0 0.0
      %826 = vmatpush1.msra.mxu0 0.0
      %827 = vmatprep.subr.mxu0 0.0
      %828 = vmatpush1.msra.mxu0 0.0
      %829 = vmatprep.subr.mxu0 0.0
      %830 = vmatpush1.msra.mxu0 0.0
      %831 = vmatprep.mubr.f32.mxu0 0.0
      %832 = vmatmul.mubr.f32.gmra.mrb[0].mxu0 %v765
      %v833 = vpop.f32.mrb[0].mxu0
      %v834 = vadd.f32 0.0, %v833
      %v835 = vpop.f32.mrb[0].mxu0
      %836 = vdwg.mxu0
      %v838 = vsel %vm342, %v689, 0
      %840 = vmatprep.subr.mxu0 0.0
      %841 = vmatpush1.msra.mxu0 %v333
      %842 = vmatprep.subr.mxu0 0.0
      %843 = vmatpush1.msra.mxu0 0.0
      %844 = vmatprep.subr.mxu0 0.0
      %845 = vmatpush1.msra.mxu0 0.0
      %846 = vmatprep.subr.mxu0 0.0
      %847 = vmatpush1.msra.mxu0 0.0
      %848 = vmatprep.subr.mxu0 0.0
      %849 = vmatpush1.msra.mxu0 0.0
      %850 = vmatprep.subr.mxu0 0.0
      %851 = vmatpush1.msra.mxu0 0.0
      %852 = vmatprep.subr.mxu0 0.0
      %853 = vmatpush1.msra.mxu0 0.0
      %854 = vmatprep.subr.mxu0 0.0
      %855 = vmatpush1.msra.mxu0 0.0
      %856 = vmatprep.subr.mxu0 0.0
      %857 = vmatpush1.msra.mxu0 0.0
      %858 = vmatprep.subr.mxu0 0.0
      %859 = vmatpush1.msra.mxu0 0.0
      %860 = vmatprep.subr.mxu0 0.0
      %861 = vmatpush1.msra.mxu0 0.0
      %862 = vmatprep.subr.mxu0 0.0
      %863 = vmatpush1.msra.mxu0 0.0
      %864 = vmatprep.subr.mxu0 0.0
      %865 = vmatpush1.msra.mxu0 0.0
      %866 = vmatprep.subr.mxu0 0.0
      %867 = vmatpush1.msra.mxu0 0.0
      %868 = vmatprep.subr.mxu0 0.0
      %869 = vmatpush1.msra.mxu0 0.0
      %870 = vmatprep.subr.mxu0 0.0
      %871 = vmatpush1.msra.mxu0 0.0
      %872 = vmatprep.subr.mxu0 0.0
      %873 = vmatpush1.msra.mxu0 0.0
      %874 = vmatprep.subr.mxu0 0.0
      %875 = vmatpush1.msra.mxu0 0.0
      %876 = vmatprep.subr.mxu0 0.0
      %877 = vmatpush1.msra.mxu0 0.0
      %878 = vmatprep.subr.mxu0 0.0
      %879 = vmatpush1.msra.mxu0 0.0
      %880 = vmatprep.subr.mxu0 0.0
      %881 = vmatpush1.msra.mxu0 0.0
      %882 = vmatprep.subr.mxu0 0.0
      %883 = vmatpush1.msra.mxu0 0.0
      %884 = vmatprep.subr.mxu0 0.0
      %885 = vmatpush1.msra.mxu0 0.0
      %886 = vmatprep.subr.mxu0 0.0
      %887 = vmatpush1.msra.mxu0 0.0
      %888 = vmatprep.subr.mxu0 0.0
      %889 = vmatpush1.msra.mxu0 0.0
      %890 = vmatprep.subr.mxu0 0.0
      %891 = vmatpush1.msra.mxu0 0.0
      %892 = vmatprep.subr.mxu0 0.0
      %893 = vmatpush1.msra.mxu0 0.0
      %894 = vmatprep.subr.mxu0 0.0
      %895 = vmatpush1.msra.mxu0 0.0
      %896 = vmatprep.subr.mxu0 0.0
      %897 = vmatpush1.msra.mxu0 0.0
      %898 = vmatprep.subr.mxu0 0.0
      %899 = vmatpush1.msra.mxu0 0.0
      %900 = vmatprep.subr.mxu0 0.0
      %901 = vmatpush1.msra.mxu0 0.0
      %902 = vmatprep.subr.mxu0 0.0
      %903 = vmatpush1.msra.mxu0 0.0
      %904 = vmatprep.mubr.f32.mxu0 0.0
      %905 = vmatmul.mubr.f32.gmra.mrb[0].mxu0 %v838
      %v906 = vpop.f32.mrb[0].mxu0
      %v907 = vadd.f32 0.0, %v906
      %v908 = vpop.f32.mrb[0].mxu0
      %909 = vdwg.mxu0
      %v911 = vsel %vm342, %v690, 0
      %913 = vmatprep.subr.mxu0 0.0
      %914 = vmatpush1.msra.mxu0 %v334
      %915 = vmatprep.subr.mxu0 0.0
      %916 = vmatpush1.msra.mxu0 0.0
      %917 = vmatprep.subr.mxu0 0.0
      %918 = vmatpush1.msra.mxu0 0.0
      %919 = vmatprep.subr.mxu0 0.0
      %920 = vmatpush1.msra.mxu0 0.0
      %921 = vmatprep.subr.mxu0 0.0
      %922 = vmatpush1.msra.mxu0 0.0
      %923 = vmatprep.subr.mxu0 0.0
      %924 = vmatpush1.msra.mxu0 0.0
      %925 = vmatprep.subr.mxu0 0.0
      %926 = vmatpush1.msra.mxu0 0.0
      %927 = vmatprep.subr.mxu0 0.0
      %928 = vmatpush1.msra.mxu0 0.0
      %929 = vmatprep.subr.mxu0 0.0
      %930 = vmatpush1.msra.mxu0 0.0
      %931 = vmatprep.subr.mxu0 0.0
      %932 = vmatpush1.msra.mxu0 0.0
      %933 = vmatprep.subr.mxu0 0.0
      %934 = vmatpush1.msra.mxu0 0.0
      %935 = vmatprep.subr.mxu0 0.0
      %936 = vmatpush1.msra.mxu0 0.0
      %937 = vmatprep.subr.mxu0 0.0
      %938 = vmatpush1.msra.mxu0 0.0
      %939 = vmatprep.subr.mxu0 0.0
      %940 = vmatpush1.msra.mxu0 0.0
      %941 = vmatprep.subr.mxu0 0.0
      %942 = vmatpush1.msra.mxu0 0.0
      %943 = vmatprep.subr.mxu0 0.0
      %944 = vmatpush1.msra.mxu0 0.0
      %945 = vmatprep.subr.mxu0 0.0
      %946 = vmatpush1.msra.mxu0 0.0
      %947 = vmatprep.subr.mxu0 0.0
      %948 = vmatpush1.msra.mxu0 0.0
      %949 = vmatprep.subr.mxu0 0.0
      %950 = vmatpush1.msra.mxu0 0.0
      %951 = vmatprep.subr.mxu0 0.0
      %952 = vmatpush1.msra.mxu0 0.0
      %953 = vmatprep.subr.mxu0 0.0
      %954 = vmatpush1.msra.mxu0 0.0
      %955 = vmatprep.subr.mxu0 0.0
      %956 = vmatpush1.msra.mxu0 0.0
      %957 = vmatprep.subr.mxu0 0.0
      %958 = vmatpush1.msra.mxu0 0.0
      %959 = vmatprep.subr.mxu0 0.0
      %960 = vmatpush1.msra.mxu0 0.0
      %961 = vmatprep.subr.mxu0 0.0
      %962 = vmatpush1.msra.mxu0 0.0
      %963 = vmatprep.subr.mxu0 0.0
      %964 = vmatpush1.msra.mxu0 0.0
      %965 = vmatprep.subr.mxu0 0.0
      %966 = vmatpush1.msra.mxu0 0.0
      %967 = vmatprep.subr.mxu0 0.0
      %968 = vmatpush1.msra.mxu0 0.0
      %969 = vmatprep.subr.mxu0 0.0
      %970 = vmatpush1.msra.mxu0 0.0
      %971 = vmatprep.subr.mxu0 0.0
      %972 = vmatpush1.msra.mxu0 0.0
      %973 = vmatprep.subr.mxu0 0.0
      %974 = vmatpush1.msra.mxu0 0.0
      %975 = vmatprep.subr.mxu0 0.0
      %976 = vmatpush1.msra.mxu0 0.0
      %977 = vmatprep.mubr.f32.mxu0 0.0
      %978 = vmatmul.mubr.f32.gmra.mrb[0].mxu0 %v911
      %v979 = vpop.f32.mrb[0].mxu0
      %v980 = vadd.f32 0.0, %v979
      %v981 = vpop.f32.mrb[0].mxu0
      %982 = vdwg.mxu0
      %983 = vst.msk [vmem:[%s321] sm:$0xff] %vm342, %v761
      %984 = vst.msk [vmem:[%s321 + $0x8] sm:$0xff] %vm342, %v834
      %985 = vst.msk [vmem:[%s321 + $0x10] sm:$0xff] %vm342, %v907
      %986 = vst.msk [vmem:[%s321 + $0x18] sm:$0xff] %vm342, %v980
      %s987 = smul.u32 4, %s20
      %p988 = scmp.lt.s32.totalorder %s19, 1
      %s989 = scalar_select %p988, %s19, 1
      %p990 = scmp.lt.s32.totalorder %s987, 3
      %s991 = scalar_select %p990, %s987, 3
      %s992 = smul.addr %s989, 4
      %s993 = sadd.s32 %s991, %s992
      %s994 = smul.addr %s993, 8
      %s995 = scalar_lea.vmem %s4, %s994
      // Predicated region
      $region37: #{_lambda_.14} parent=35 // pred_check
        %p996 = pneg %p157
      $region38: #{_lambda_.14} parent=35 // pred_check_branch
        %998 = sbr.rel (%p996) target = $region40
      $region39: #{_lambda_.14} parent=35 // pred_region
        %s999 = smul.u32 4, %s20
      $region40: #{_lambda_.14} parent=35 // pred_fallthru
        _
    $region36: #{_lambda_.14} parent=5 // pred_fallthru
      _
    %p1000 = scmp.le.s32.totalorder 2, %s10
    // Predicated region
    $region41: #{_lambda_.14} parent=5 // pred_check
      %p1001 = pneg %p1000
    $region42: #{_lambda_.14} parent=5 // pred_check_branch
      %1003 = sbr.rel (%p1001) target = $region44
    $region43: #{_lambda_.14} parent=5 // pred_region
      %s1004 = ssub.s32 %s10, 2
      // Predicated region
      $region45: #{_lambda_.14} parent=43 // pred_check
        %p1005 = pneg %p163
      $region46: #{_lambda_.14} parent=43 // pred_check_branch
        %1007 = sbr.rel (%p1005) target = $region48
      $region47: #{_lambda_.14} parent=43 // pred_region
        %s1008 = smul.u32 4, %s22
        %p1009 = scmp.lt.s32.totalorder %s21, 1
        %s1010 = scalar_select %p1009, %s21, 1
        %p1011 = scmp.lt.s32.totalorder %s1008, 3
        %s1012 = scalar_select %p1011, %s1008, 3
        %s1013 = smul.addr %s1010, 4
        %s1014 = sadd.s32 %s1012, %s1013
        %s1015 = smul.addr %s1014, 8
        %s1016 = scalar_lea.vmem %s4, %s1015
      $region48: #{_lambda_.14} parent=43 // pred_fallthru
        _
    $region44: #{_lambda_.14} parent=5 // pred_fallthru
      _
  $region6: #{_lambda_.14} parent=0 // loop_footer
    %s14 = sadd.s32 1, %s10
  $region7: #{_lambda_.14} parent=0 // loop_footer_branch
    %9 = sbr.rel target = $region3
  $region8: #{_lambda_.14} parent=0 // loop_exit
    _

// kernel: _lambda_.15
$region0: #{_lambda_.15}
  #allocation0 [shape = 'u32[]', space=smem, size = 0x4, offset = 0x4, fixed_abs, tag = 'smem constant byte address 0x4 - core index']
  #allocation1 [shape = 'u32[144,128]{1,0:T(1,128)}', space=vmem, size = 0x12000, scoped, tag = 'internal scratch']
  #allocation2 [shape = 'f32[16,32]{1,0:T(8,128)}', space=vmem, size = 0x2000, scoped, tag = 'scratch operand']
  %s0 = inlined_call_operand.vmem [shape: f32[16,32], index: 0, kind: input, shape index: {}]
  %s1 = inlined_call_operand.vmem [shape: f32[32,32], index: 1, kind: input, shape index: {}]
  %s2 = inlined_call_operand.vmem [shape: f32[1,32], index: 2, kind: input, shape index: {}]
  %s3 = inlined_call_operand.vmem [shape: f32[16,32], index: 3, kind: input, shape index: {}]
  %s4 = inlined_call_operand.vmem [shape: f32[1,32], index: 4, kind: input, shape index: {}]
  %s5 = inlined_call_operand.vmem [shape: f32[1,32], index: 5, kind: input, shape index: {}]
  %s6 = inlined_call_operand.vmem [shape: f32[16,32], index: 6, kind: output, shape index: {}]
  %s7 = sld [smem:[#allocation0]]
  $region42: #{_lambda_.15} parent=0
    _
  %s9 = ssub.s32 1, %s7
  %s10 = scalar_select 0, %s9, %s7
  // Predicated region
  $region2: #{_lambda_.15} parent=0 // pred_check
    _
  $region3: #{_lambda_.15} parent=0 // pred_check_branch
    %12 = sbr.rel (0) target = $region5
  $region4: #{_lambda_.15} parent=0 // pred_region
    _
  $region5: #{_lambda_.15} parent=0 // pred_fallthru
    _
  // Predicated region
  $region6: #{_lambda_.15} parent=0 // pred_check
    _
  $region7: #{_lambda_.15} parent=0 // pred_check_branch
    %14 = sbr.rel (0) target = $region9
  $region8: #{_lambda_.15} parent=0 // pred_region
    _
  $region9: #{_lambda_.15} parent=0 // pred_fallthru
    _
  // Predicated region
  $region10: #{_lambda_.15} parent=0 // pred_check
    _
  $region11: #{_lambda_.15} parent=0 // pred_check_branch
    %16 = sbr.rel (0) target = $region13
  $region12: #{_lambda_.15} parent=0 // pred_region
    _
  $region13: #{_lambda_.15} parent=0 // pred_fallthru
    _
  // Predicated region
  $region14: #{_lambda_.15} parent=0 // pred_check
    _
  $region15: #{_lambda_.15} parent=0 // pred_check_branch
    %18 = sbr.rel (0) target = $region17
  $region16: #{_lambda_.15} parent=0 // pred_region
    _
  $region17: #{_lambda_.15} parent=0 // pred_fallthru
    _
  // Predicated region
  $region18: #{_lambda_.15} parent=0 // pred_check
    _
  $region19: #{_lambda_.15} parent=0 // pred_check_branch
    %20 = sbr.rel (0) target = $region21
  $region20: #{_lambda_.15} parent=0 // pred_region
    _
  $region21: #{_lambda_.15} parent=0 // pred_fallthru
    _
  // Predicated region
  $region22: #{_lambda_.15} parent=0 // pred_check
    _
  $region23: #{_lambda_.15} parent=0 // pred_check_branch
    %22 = sbr.rel (0) target = $region25
  $region24: #{_lambda_.15} parent=0 // pred_region
    _
  $region25: #{_lambda_.15} parent=0 // pred_fallthru
    _
  %p23 = scmp.eq.s32.totalorder 0, 0
  // Predicated region
  $region26: #{_lambda_.15} parent=0 // pred_check
    %p24 = pneg %p23
  $region27: #{_lambda_.15} parent=0 // pred_check_branch
    %26 = sbr.rel (%p24) target = $region29
  $region28: #{_lambda_.15} parent=0 // pred_region
    %vm27 = vcmask 261120
    %28 = vst.msk [vmem:[#allocation2] sm:$0xff] %vm27, 0.0
    %29 = vst.msk [vmem:[#allocation2 + $0x8] sm:$0xff] %vm27, 0.0
  $region29: #{_lambda_.15} parent=0 // pred_fallthru
    _
  %v30 = vld [vmem:[#allocation2] sm:$0xff]
  %v31 = vld [vmem:[#allocation2 + $0x8] sm:$0xff]
  %v32 = vld [vmem:[%s0] sm:$0xff]
  %v33 = vld [vmem:[%s0 + $0x8] sm:$0xff]
  %v34 = vld [vmem:[%s1] sm:$0xff]
  %v35 = vld [vmem:[%s1 + $0x8] sm:$0xff]
  %v36 = vld [vmem:[%s1 + $0x10] sm:$0xff]
  %v37 = vld [vmem:[%s1 + $0x18] sm:$0xff]
  %vm38 = vcmask 261120
  %v40 = vsel %vm38, %v32, 0
  %v43 = vsel %vm38, %v33, 0
  %45 = vmatprep.subr.mxu0 0.0
  %46 = vmatpush1.msra.mxu0 %v34
  %47 = vmatprep.subr.mxu0 0.0
  %48 = vmatpush1.msra.mxu0 %v35
  %49 = vmatprep.subr.mxu0 0.0
  %50 = vmatpush1.msra.mxu0 %v36
  %51 = vmatprep.subr.mxu0 0.0
  %52 = vmatpush1.msra.mxu0 %v37
  %53 = vmatprep.subr.mxu0 0.0
  %54 = vmatpush1.msra.mxu0 0.0
  %55 = vmatprep.subr.mxu0 0.0
  %56 = vmatpush1.msra.mxu0 0.0
  %57 = vmatprep.subr.mxu0 0.0
  %58 = vmatpush1.msra.mxu0 0.0
  %59 = vmatprep.subr.mxu0 0.0
  %60 = vmatpush1.msra.mxu0 0.0
  %61 = vmatprep.subr.mxu0 0.0
  %62 = vmatpush1.msra.mxu0 0.0
  %63 = vmatprep.subr.mxu0 0.0
  %64 = vmatpush1.msra.mxu0 0.0
  %65 = vmatprep.subr.mxu0 0.0
  %66 = vmatpush1.msra.mxu0 0.0
  %67 = vmatprep.subr.mxu0 0.0
  %68 = vmatpush1.msra.mxu0 0.0
  %69 = vmatprep.subr.mxu0 0.0
  %70 = vmatpush1.msra.mxu0 0.0
  %71 = vmatprep.subr.mxu0 0.0
  %72 = vmatpush1.msra.mxu0 0.0
  %73 = vmatprep.subr.mxu0 0.0
  %74 = vmatpush1.msra.mxu0 0.0
  %75 = vmatprep.subr.mxu0 0.0
  %76 = vmatpush1.msra.mxu0 0.0
  %77 = vmatprep.subr.mxu0 0.0
  %78 = vmatpush1.msra.mxu0 0.0
  %79 = vmatprep.subr.mxu0 0.0
  %80 = vmatpush1.msra.mxu0 0.0
  %81 = vmatprep.subr.mxu0 0.0
  %82 = vmatpush1.msra.mxu0 0.0
  %83 = vmatprep.subr.mxu0 0.0
  %84 = vmatpush1.msra.mxu0 0.0
  %85 = vmatprep.subr.mxu0 0.0
  %86 = vmatpush1.msra.mxu0 0.0
  %87 = vmatprep.subr.mxu0 0.0
  %88 = vmatpush1.msra.mxu0 0.0
  %89 = vmatprep.subr.mxu0 0.0
  %90 = vmatpush1.msra.mxu0 0.0
  %91 = vmatprep.subr.mxu0 0.0
  %92 = vmatpush1.msra.mxu0 0.0
  %93 = vmatprep.subr.mxu0 0.0
  %94 = vmatpush1.msra.mxu0 0.0
  %95 = vmatprep.subr.mxu0 0.0
  %96 = vmatpush1.msra.mxu0 0.0
  %97 = vmatprep.subr.mxu0 0.0
  %98 = vmatpush1.msra.mxu0 0.0
  %99 = vmatprep.subr.mxu0 0.0
  %100 = vmatpush1.msra.mxu0 0.0
  %101 = vmatprep.subr.mxu0 0.0
  %102 = vmatpush1.msra.mxu0 0.0
  %103 = vmatprep.subr.mxu0 0.0
  %104 = vmatpush1.msra.mxu0 0.0
  %105 = vmatprep.subr.mxu0 0.0
  %106 = vmatpush1.msra.mxu0 0.0
  %107 = vmatprep.subr.mxu0 0.0
  %108 = vmatpush1.msra.mxu0 0.0
  %109 = vmatprep.mubr.f32.mxu0 0.0
  %110 = vmatmul.mubr.f32.gmra.mrb[0].mxu0 %v40
  %v111 = vpop.f32.mrb[0].mxu0
  %v112 = vadd.f32 0.0, %v111
  %v113 = vpop.f32.mrb[0].mxu0
  %114 = vmatprep.mubr.f32.mxu0 0.0
  %115 = vmatmul.mubr.f32.gmra.mrb[0].mxu0 %v43
  %v116 = vpop.f32.mrb[0].mxu0
  %v117 = vadd.f32 0.0, %v116
  %v118 = vpop.f32.mrb[0].mxu0
  %119 = vdwg.mxu0
  %v120 = vadd.f32 %v30, %v112
  %v121 = vadd.f32 %v31, %v117
  %122 = vst.msk [vmem:[#allocation2] sm:$0xff] %vm38, %v120
  %123 = vst.msk [vmem:[#allocation2 + $0x8] sm:$0xff] %vm38, %v121
  // Predicated region
  $region30: #{_lambda_.15} parent=0 // pred_check
    %p124 = pneg %p23
  $region31: #{_lambda_.15} parent=0 // pred_check_branch
    %126 = sbr.rel (%p124) target = $region33
  $region32: #{_lambda_.15} parent=0 // pred_region
    %v127 = vld [vmem:[#allocation2] sm:$0xff]
    %v128 = vld [vmem:[#allocation2 + $0x8] sm:$0xff]
    %v129 = vld [vmem:[%s2] sm:$0x1]
    %v131 = vlaneseq
    %v132 = vshrl.u32 %v131, 7
    %v133 = vsub.s32 0, %v132
    %v134 = vrot.slane %v129, %v133
    %v136 = vadd.f32 %v127, %v134
    %v137 = vadd.f32 %v128, %v134
    %v138 = vld [vmem:[%s3] sm:$0xff]
    %v139 = vld [vmem:[%s3 + $0x8] sm:$0xff]
    %v140 = vadd.f32 %v136, %v138
    %v141 = vadd.f32 %v137, %v139
    %v142 = vsel %vm38, %v140, 0.0
    %143 = vadd.xlane.f32.xlu0 %v142
    %v144 = vpop.xlane.xlu0 %143
    %v145 = vsel %vm38, %v141, 0.0
    %146 = vadd.xlane.f32.xlu0 %v145
    %v147 = vpop.xlane.xlu0 %146
    %v148 = vrcp.pop 32.0
    %v149 = vmul.f32 %v144, %v148
    %v150 = vmul.f32 %v147, %v148
    %v151 = vsub.f32 %v140, %v149
    %v152 = vsub.f32 %v141, %v150
    %v153 = vmul.f32 %v151, %v151
    %v154 = vmul.f32 %v152, %v152
    %v155 = vsel %vm38, %v153, 0.0
    %156 = vadd.xlane.f32.xlu0 %v155
    %v157 = vpop.xlane.xlu0 %156
    %v158 = vsel %vm38, %v154, 0.0
    %159 = vadd.xlane.f32.xlu0 %v158
    %v160 = vpop.xlane.xlu0 %159
    %v161 = vmul.f32 %v157, %v148
    %v162 = vmul.f32 %v160, %v148
    %v163 = vadd.f32 %v161, 1e-12
    %v164 = vadd.f32 %v162, 1e-12
    %v165 = vrsqrt.pop %v163
    %v166 = vrsqrt.pop %v164
    %v167 = vmul.f32 %v151, %v165
    %v168 = vmul.f32 %v152, %v166
    %v169 = vld [vmem:[%s4] sm:$0x1]
    %v171 = vlaneseq
    %v172 = vshrl.u32 %v171, 7
    %v173 = vsub.s32 0, %v172
    %v174 = vrot.slane %v169, %v173
    %v176 = vmul.f32 %v167, %v174
    %v177 = vmul.f32 %v168, %v174
    %v178 = vld [vmem:[%s5] sm:$0x1]
    %v180 = vlaneseq
    %v181 = vshrl.u32 %v180, 7
    %v182 = vsub.s32 0, %v181
    %v183 = vrot.slane %v178, %v182
    %v185 = vadd.f32 %v176, %v183
    %v186 = vadd.f32 %v177, %v183
    %187 = vst.msk [vmem:[%s6] sm:$0xff] %vm38, %v185
    %188 = vst.msk [vmem:[%s6 + $0x8] sm:$0xff] %vm38, %v186
  $region33: #{_lambda_.15} parent=0 // pred_fallthru
    _
  // Predicated region
  $region34: #{_lambda_.15} parent=0 // pred_check
    _
  $region35: #{_lambda_.15} parent=0 // pred_check_branch
    %190 = sbr.rel (0) target = $region37
  $region36: #{_lambda_.15} parent=0 // pred_region
    _
  $region37: #{_lambda_.15} parent=0 // pred_fallthru
    _
  // Predicated region
  $region38: #{_lambda_.15} parent=0 // pred_check
    _
  $region39: #{_lambda_.15} parent=0 // pred_check_branch
    %192 = sbr.rel (0) target = $region41
  $region40: #{_lambda_.15} parent=0 // pred_region
    _
  $region41: #{_lambda_.15} parent=0 // pred_fallthru
    _

// kernel: _lambda_.16
$region0: #{_lambda_.16}
  #allocation0 [shape = 'u32[]', space=smem, size = 0x4, offset = 0x4, fixed_abs, tag = 'smem constant byte address 0x4 - core index']
  #allocation1 [shape = 'u32[144,128]{1,0:T(1,128)}', space=vmem, size = 0x12000, scoped, tag = 'internal scratch']
  #allocation2 [shape = 'f32[16,64]{1,0:T(8,128)}', space=vmem, size = 0x2000, scoped, tag = 'scratch operand']
  %s0 = inlined_call_operand.vmem [shape: f32[16,32], index: 0, kind: input, shape index: {}]
  %s1 = inlined_call_operand.vmem [shape: f32[32,64], index: 1, kind: input, shape index: {}]
  %s2 = inlined_call_operand.vmem [shape: f32[1,64], index: 2, kind: input, shape index: {}]
  %s3 = inlined_call_operand.vmem [shape: f32[16,64], index: 3, kind: output, shape index: {}]
  %s4 = sld [smem:[#allocation0]]
  $region30: #{_lambda_.16} parent=0
    _
  %s6 = ssub.s32 1, %s4
  %s7 = scalar_select 0, %s6, %s4
  // Predicated region
  $region2: #{_lambda_.16} parent=0 // pred_check
    _
  $region3: #{_lambda_.16} parent=0 // pred_check_branch
    %9 = sbr.rel (0) target = $region5
  $region4: #{_lambda_.16} parent=0 // pred_region
    _
  $region5: #{_lambda_.16} parent=0 // pred_fallthru
    _
  // Predicated region
  $region6: #{_lambda_.16} parent=0 // pred_check
    _
  $region7: #{_lambda_.16} parent=0 // pred_check_branch
    %11 = sbr.rel (0) target = $region9
  $region8: #{_lambda_.16} parent=0 // pred_region
    _
  $region9: #{_lambda_.16} parent=0 // pred_fallthru
    _
  // Predicated region
  $region10: #{_lambda_.16} parent=0 // pred_check
    _
  $region11: #{_lambda_.16} parent=0 // pred_check_branch
    %13 = sbr.rel (0) target = $region13
  $region12: #{_lambda_.16} parent=0 // pred_region
    _
  $region13: #{_lambda_.16} parent=0 // pred_fallthru
    _
  %p14 = scmp.eq.s32.totalorder 0, 0
  // Predicated region
  $region14: #{_lambda_.16} parent=0 // pred_check
    %p15 = pneg %p14
  $region15: #{_lambda_.16} parent=0 // pred_check_branch
    %17 = sbr.rel (%p15) target = $region17
  $region16: #{_lambda_.16} parent=0 // pred_region
    %vm18 = vcmask 523264
    %19 = vst.msk [vmem:[#allocation2] sm:$0xff] %vm18, 0.0
    %20 = vst.msk [vmem:[#allocation2 + $0x8] sm:$0xff] %vm18, 0.0
  $region17: #{_lambda_.16} parent=0 // pred_fallthru
    _
  %v21 = vld [vmem:[#allocation2] sm:$0xff]
  %v22 = vld [vmem:[#allocation2 + $0x8] sm:$0xff]
  %v23 = vld [vmem:[%s0] sm:$0xff]
  %v24 = vld [vmem:[%s0 + $0x8] sm:$0xff]
  %v25 = vld [vmem:[%s1] sm:$0xff]
  %v26 = vld [vmem:[%s1 + $0x8] sm:$0xff]
  %v27 = vld [vmem:[%s1 + $0x10] sm:$0xff]
  %v28 = vld [vmem:[%s1 + $0x18] sm:$0xff]
  %vm29 = vcmask 261120
  %v31 = vsel %vm29, %v23, 0
  %v34 = vsel %vm29, %v24, 0
  %36 = vmatprep.subr.mxu0 0.0
  %37 = vmatpush1.msra.mxu0 %v25
  %38 = vmatprep.subr.mxu0 0.0
  %39 = vmatpush1.msra.mxu0 %v26
  %40 = vmatprep.subr.mxu0 0.0
  %41 = vmatpush1.msra.mxu0 %v27
  %42 = vmatprep.subr.mxu0 0.0
  %43 = vmatpush1.msra.mxu0 %v28
  %44 = vmatprep.subr.mxu0 0.0
  %45 = vmatpush1.msra.mxu0 0.0
  %46 = vmatprep.subr.mxu0 0.0
  %47 = vmatpush1.msra.mxu0 0.0
  %48 = vmatprep.subr.mxu0 0.0
  %49 = vmatpush1.msra.mxu0 0.0
  %50 = vmatprep.subr.mxu0 0.0
  %51 = vmatpush1.msra.mxu0 0.0
  %52 = vmatprep.subr.mxu0 0.0
  %53 = vmatpush1.msra.mxu0 0.0
  %54 = vmatprep.subr.mxu0 0.0
  %55 = vmatpush1.msra.mxu0 0.0
  %56 = vmatprep.subr.mxu0 0.0
  %57 = vmatpush1.msra.mxu0 0.0
  %58 = vmatprep.subr.mxu0 0.0
  %59 = vmatpush1.msra.mxu0 0.0
  %60 = vmatprep.subr.mxu0 0.0
  %61 = vmatpush1.msra.mxu0 0.0
  %62 = vmatprep.subr.mxu0 0.0
  %63 = vmatpush1.msra.mxu0 0.0
  %64 = vmatprep.subr.mxu0 0.0
  %65 = vmatpush1.msra.mxu0 0.0
  %66 = vmatprep.subr.mxu0 0.0
  %67 = vmatpush1.msra.mxu0 0.0
  %68 = vmatprep.subr.mxu0 0.0
  %69 = vmatpush1.msra.mxu0 0.0
  %70 = vmatprep.subr.mxu0 0.0
  %71 = vmatpush1.msra.mxu0 0.0
  %72 = vmatprep.subr.mxu0 0.0
  %73 = vmatpush1.msra.mxu0 0.0
  %74 = vmatprep.subr.mxu0 0.0
  %75 = vmatpush1.msra.mxu0 0.0
  %76 = vmatprep.subr.mxu0 0.0
  %77 = vmatpush1.msra.mxu0 0.0
  %78 = vmatprep.subr.mxu0 0.0
  %79 = vmatpush1.msra.mxu0 0.0
  %80 = vmatprep.subr.mxu0 0.0
  %81 = vmatpush1.msra.mxu0 0.0
  %82 = vmatprep.subr.mxu0 0.0
  %83 = vmatpush1.msra.mxu0 0.0
  %84 = vmatprep.subr.mxu0 0.0
  %85 = vmatpush1.msra.mxu0 0.0
  %86 = vmatprep.subr.mxu0 0.0
  %87 = vmatpush1.msra.mxu0 0.0
  %88 = vmatprep.subr.mxu0 0.0
  %89 = vmatpush1.msra.mxu0 0.0
  %90 = vmatprep.subr.mxu0 0.0
  %91 = vmatpush1.msra.mxu0 0.0
  %92 = vmatprep.subr.mxu0 0.0
  %93 = vmatpush1.msra.mxu0 0.0
  %94 = vmatprep.subr.mxu0 0.0
  %95 = vmatpush1.msra.mxu0 0.0
  %96 = vmatprep.subr.mxu0 0.0
  %97 = vmatpush1.msra.mxu0 0.0
  %98 = vmatprep.subr.mxu0 0.0
  %99 = vmatpush1.msra.mxu0 0.0
  %100 = vmatprep.mubr.f32.mxu0 0.0
  %101 = vmatmul.mubr.f32.gmra.mrb[0].mxu0 %v31
  %v102 = vpop.f32.mrb[0].mxu0
  %v103 = vadd.f32 0.0, %v102
  %v104 = vpop.f32.mrb[0].mxu0
  %105 = vmatprep.mubr.f32.mxu0 0.0
  %106 = vmatmul.mubr.f32.gmra.mrb[0].mxu0 %v34
  %v107 = vpop.f32.mrb[0].mxu0
  %v108 = vadd.f32 0.0, %v107
  %v109 = vpop.f32.mrb[0].mxu0
  %110 = vdwg.mxu0
  %v111 = vadd.f32 %v21, %v103
  %v112 = vadd.f32 %v22, %v108
  %vm113 = vcmask 523264
  %114 = vst.msk [vmem:[#allocation2] sm:$0xff] %vm113, %v111
  %115 = vst.msk [vmem:[#allocation2 + $0x8] sm:$0xff] %vm113, %v112
  // Predicated region
  $region18: #{_lambda_.16} parent=0 // pred_check
    %p116 = pneg %p14
  $region19: #{_lambda_.16} parent=0 // pred_check_branch
    %118 = sbr.rel (%p116) target = $region21
  $region20: #{_lambda_.16} parent=0 // pred_region
    %v119 = vld [vmem:[#allocation2] sm:$0xff]
    %v120 = vld [vmem:[#allocation2 + $0x8] sm:$0xff]
    %v121 = vld [vmem:[%s2] sm:$0x1]
    %v123 = vlaneseq
    %v124 = vshrl.u32 %v123, 7
    %v125 = vsub.s32 0, %v124
    %v126 = vrot.slane %v121, %v125
    %v128 = vadd.f32 %v119, %v126
    %v129 = vadd.f32 %v120, %v126
    %v130 = vmul.f32 %v128, 0.5
    %v131 = vmul.f32 %v129, 0.5
    %v132 = vmul.f32 %v128, 0.044715
    %v133 = vmul.f32 %v129, 0.044715
    %v134 = vmul.f32 %v132, %v128
    %v135 = vmul.f32 %v133, %v129
    %v136 = vmul.f32 %v134, %v128
    %v137 = vmul.f32 %v135, %v129
    %v138 = vadd.f32 %v128, %v136
    %v139 = vadd.f32 %v129, %v137
    %v140 = vmul.f32 %v138, 0.7978846
    %v141 = vmul.f32 %v139, 0.7978846
    %v142 = vtanh.pop %v140
    %v143 = vtanh.pop %v141
    %v144 = vadd.f32 %v142, 1.0
    %v145 = vadd.f32 %v143, 1.0
    %v146 = vmul.f32 %v130, %v144
    %v147 = vmul.f32 %v131, %v145
    %148 = vst.msk [vmem:[%s3] sm:$0xff] %vm113, %v146
    %149 = vst.msk [vmem:[%s3 + $0x8] sm:$0xff] %vm113, %v147
  $region21: #{_lambda_.16} parent=0 // pred_fallthru
    _
  // Predicated region
  $region22: #{_lambda_.16} parent=0 // pred_check
    _
  $region23: #{_lambda_.16} parent=0 // pred_check_branch
    %151 = sbr.rel (0) target = $region25
  $region24: #{_lambda_.16} parent=0 // pred_region
    _
  $region25: #{_lambda_.16} parent=0 // pred_fallthru
    _
  // Predicated region
  $region26: #{_lambda_.16} parent=0 // pred_check
    _
  $region27: #{_lambda_.16} parent=0 // pred_check_branch
    %153 = sbr.rel (0) target = $region29
  $region28: #{_lambda_.16} parent=0 // pred_region
    _
  $region29: #{_lambda_.16} parent=0 // pred_fallthru
    _

// kernel: _lambda_.17
$region0: #{_lambda_.17}
  #allocation0 [shape = 'u32[]', space=smem, size = 0x4, offset = 0x4, fixed_abs, tag = 'smem constant byte address 0x4 - core index']
  #allocation1 [shape = 'u32[144,128]{1,0:T(1,128)}', space=vmem, size = 0x12000, scoped, tag = 'internal scratch']
  #allocation2 [shape = 'f32[16,32]{1,0:T(8,128)}', space=vmem, size = 0x2000, scoped, tag = 'scratch operand']
  %s0 = inlined_call_operand.vmem [shape: f32[16,64], index: 0, kind: input, shape index: {}]
  %s1 = inlined_call_operand.vmem [shape: f32[64,32], index: 1, kind: input, shape index: {}]
  %s2 = inlined_call_operand.vmem [shape: f32[1,32], index: 2, kind: input, shape index: {}]
  %s3 = inlined_call_operand.vmem [shape: f32[16,32], index: 3, kind: input, shape index: {}]
  %s4 = inlined_call_operand.vmem [shape: f32[1,32], index: 4, kind: input, shape index: {}]
  %s5 = inlined_call_operand.vmem [shape: f32[1,32], index: 5, kind: input, shape index: {}]
  %s6 = inlined_call_operand.vmem [shape: f32[16,32], index: 6, kind: output, shape index: {}]
  %s7 = sld [smem:[#allocation0]]
  $region42: #{_lambda_.17} parent=0
    _
  %s9 = ssub.s32 1, %s7
  %s10 = scalar_select 0, %s9, %s7
  // Predicated region
  $region2: #{_lambda_.17} parent=0 // pred_check
    _
  $region3: #{_lambda_.17} parent=0 // pred_check_branch
    %12 = sbr.rel (0) target = $region5
  $region4: #{_lambda_.17} parent=0 // pred_region
    _
  $region5: #{_lambda_.17} parent=0 // pred_fallthru
    _
  // Predicated region
  $region6: #{_lambda_.17} parent=0 // pred_check
    _
  $region7: #{_lambda_.17} parent=0 // pred_check_branch
    %14 = sbr.rel (0) target = $region9
  $region8: #{_lambda_.17} parent=0 // pred_region
    _
  $region9: #{_lambda_.17} parent=0 // pred_fallthru
    _
  // Predicated region
  $region10: #{_lambda_.17} parent=0 // pred_check
    _
  $region11: #{_lambda_.17} parent=0 // pred_check_branch
    %16 = sbr.rel (0) target = $region13
  $region12: #{_lambda_.17} parent=0 // pred_region
    _
  $region13: #{_lambda_.17} parent=0 // pred_fallthru
    _
  // Predicated region
  $region14: #{_lambda_.17} parent=0 // pred_check
    _
  $region15: #{_lambda_.17} parent=0 // pred_check_branch
    %18 = sbr.rel (0) target = $region17
  $region16: #{_lambda_.17} parent=0 // pred_region
    _
  $region17: #{_lambda_.17} parent=0 // pred_fallthru
    _
  // Predicated region
  $region18: #{_lambda_.17} parent=0 // pred_check
    _
  $region19: #{_lambda_.17} parent=0 // pred_check_branch
    %20 = sbr.rel (0) target = $region21
  $region20: #{_lambda_.17} parent=0 // pred_region
    _
  $region21: #{_lambda_.17} parent=0 // pred_fallthru
    _
  // Predicated region
  $region22: #{_lambda_.17} parent=0 // pred_check
    _
  $region23: #{_lambda_.17} parent=0 // pred_check_branch
    %22 = sbr.rel (0) target = $region25
  $region24: #{_lambda_.17} parent=0 // pred_region
    _
  $region25: #{_lambda_.17} parent=0 // pred_fallthru
    _
  %p23 = scmp.eq.s32.totalorder 0, 0
  // Predicated region
  $region26: #{_lambda_.17} parent=0 // pred_check
    %p24 = pneg %p23
  $region27: #{_lambda_.17} parent=0 // pred_check_branch
    %26 = sbr.rel (%p24) target = $region29
  $region28: #{_lambda_.17} parent=0 // pred_region
    %vm27 = vcmask 261120
    %28 = vst.msk [vmem:[#allocation2] sm:$0xff] %vm27, 0.0
    %29 = vst.msk [vmem:[#allocation2 + $0x8] sm:$0xff] %vm27, 0.0
  $region29: #{_lambda_.17} parent=0 // pred_fallthru
    _
  %v30 = vld [vmem:[#allocation2] sm:$0xff]
  %v31 = vld [vmem:[#allocation2 + $0x8] sm:$0xff]
  %v32 = vld [vmem:[%s0] sm:$0xff]
  %v33 = vld [vmem:[%s0 + $0x8] sm:$0xff]
  %v34 = vld [vmem:[%s1] sm:$0xff]
  %v35 = vld [vmem:[%s1 + $0x8] sm:$0xff]
  %v36 = vld [vmem:[%s1 + $0x10] sm:$0xff]
  %v37 = vld [vmem:[%s1 + $0x18] sm:$0xff]
  %v38 = vld [vmem:[%s1 + $0x20] sm:$0xff]
  %v39 = vld [vmem:[%s1 + $0x28] sm:$0xff]
  %v40 = vld [vmem:[%s1 + $0x30] sm:$0xff]
  %v41 = vld [vmem:[%s1 + $0x38] sm:$0xff]
  %vm42 = vcmask 523264
  %v44 = vsel %vm42, %v32, 0
  %v47 = vsel %vm42, %v33, 0
  %49 = vmatprep.subr.mxu0 0.0
  %50 = vmatpush1.msra.mxu0 %v34
  %51 = vmatprep.subr.mxu0 0.0
  %52 = vmatpush1.msra.mxu0 %v35
  %53 = vmatprep.subr.mxu0 0.0
  %54 = vmatpush1.msra.mxu0 %v36
  %55 = vmatprep.subr.mxu0 0.0
  %56 = vmatpush1.msra.mxu0 %v37
  %57 = vmatprep.subr.mxu0 0.0
  %58 = vmatpush1.msra.mxu0 %v38
  %59 = vmatprep.subr.mxu0 0.0
  %60 = vmatpush1.msra.mxu0 %v39
  %61 = vmatprep.subr.mxu0 0.0
  %62 = vmatpush1.msra.mxu0 %v40
  %63 = vmatprep.subr.mxu0 0.0
  %64 = vmatpush1.msra.mxu0 %v41
  %65 = vmatprep.subr.mxu0 0.0
  %66 = vmatpush1.msra.mxu0 0.0
  %67 = vmatprep.subr.mxu0 0.0
  %68 = vmatpush1.msra.mxu0 0.0
  %69 = vmatprep.subr.mxu0 0.0
  %70 = vmatpush1.msra.mxu0 0.0
  %71 = vmatprep.subr.mxu0 0.0
  %72 = vmatpush1.msra.mxu0 0.0
  %73 = vmatprep.subr.mxu0 0.0
  %74 = vmatpush1.msra.mxu0 0.0
  %75 = vmatprep.subr.mxu0 0.0
  %76 = vmatpush1.msra.mxu0 0.0
  %77 = vmatprep.subr.mxu0 0.0
  %78 = vmatpush1.msra.mxu0 0.0
  %79 = vmatprep.subr.mxu0 0.0
  %80 = vmatpush1.msra.mxu0 0.0
  %81 = vmatprep.subr.mxu0 0.0
  %82 = vmatpush1.msra.mxu0 0.0
  %83 = vmatprep.subr.mxu0 0.0
  %84 = vmatpush1.msra.mxu0 0.0
  %85 = vmatprep.subr.mxu0 0.0
  %86 = vmatpush1.msra.mxu0 0.0
  %87 = vmatprep.subr.mxu0 0.0
  %88 = vmatpush1.msra.mxu0 0.0
  %89 = vmatprep.subr.mxu0 0.0
  %90 = vmatpush1.msra.mxu0 0.0
  %91 = vmatprep.subr.mxu0 0.0
  %92 = vmatpush1.msra.mxu0 0.0
  %93 = vmatprep.subr.mxu0 0.0
  %94 = vmatpush1.msra.mxu0 0.0
  %95 = vmatprep.subr.mxu0 0.0
  %96 = vmatpush1.msra.mxu0 0.0
  %97 = vmatprep.subr.mxu0 0.0
  %98 = vmatpush1.msra.mxu0 0.0
  %99 = vmatprep.subr.mxu0 0.0
  %100 = vmatpush1.msra.mxu0 0.0
  %101 = vmatprep.subr.mxu0 0.0
  %102 = vmatpush1.msra.mxu0 0.0
  %103 = vmatprep.subr.mxu0 0.0
  %104 = vmatpush1.msra.mxu0 0.0
  %105 = vmatprep.subr.mxu0 0.0
  %106 = vmatpush1.msra.mxu0 0.0
  %107 = vmatprep.subr.mxu0 0.0
  %108 = vmatpush1.msra.mxu0 0.0
  %109 = vmatprep.subr.mxu0 0.0
  %110 = vmatpush1.msra.mxu0 0.0
  %111 = vmatprep.subr.mxu0 0.0
  %112 = vmatpush1.msra.mxu0 0.0
  %113 = vmatprep.mubr.f32.mxu0 0.0
  %114 = vmatmul.mubr.f32.gmra.mrb[0].mxu0 %v44
  %v115 = vpop.f32.mrb[0].mxu0
  %v116 = vadd.f32 0.0, %v115
  %v117 = vpop.f32.mrb[0].mxu0
  %118 = vmatprep.mubr.f32.mxu0 0.0
  %119 = vmatmul.mubr.f32.gmra.mrb[0].mxu0 %v47
  %v120 = vpop.f32.mrb[0].mxu0
  %v121 = vadd.f32 0.0, %v120
  %v122 = vpop.f32.mrb[0].mxu0
  %123 = vdwg.mxu0
  %v124 = vadd.f32 %v30, %v116
  %v125 = vadd.f32 %v31, %v121
  %vm126 = vcmask 261120
  %127 = vst.msk [vmem:[#allocation2] sm:$0xff] %vm126, %v124
  %128 = vst.msk [vmem:[#allocation2 + $0x8] sm:$0xff] %vm126, %v125
  // Predicated region
  $region30: #{_lambda_.17} parent=0 // pred_check
    %p129 = pneg %p23
  $region31: #{_lambda_.17} parent=0 // pred_check_branch
    %131 = sbr.rel (%p129) target = $region33
  $region32: #{_lambda_.17} parent=0 // pred_region
    %v132 = vld [vmem:[#allocation2] sm:$0xff]
    %v133 = vld [vmem:[#allocation2 + $0x8] sm:$0xff]
    %v134 = vld [vmem:[%s2] sm:$0x1]
    %v136 = vlaneseq
    %v137 = vshrl.u32 %v136, 7
    %v138 = vsub.s32 0, %v137
    %v139 = vrot.slane %v134, %v138
    %v141 = vadd.f32 %v132, %v139
    %v142 = vadd.f32 %v133, %v139
    %v143 = vld [vmem:[%s3] sm:$0xff]
    %v144 = vld [vmem:[%s3 + $0x8] sm:$0xff]
    %v145 = vadd.f32 %v141, %v143
    %v146 = vadd.f32 %v142, %v144
    %v147 = vsel %vm126, %v145, 0.0
    %148 = vadd.xlane.f32.xlu0 %v147
    %v149 = vpop.xlane.xlu0 %148
    %v150 = vsel %vm126, %v146, 0.0
    %151 = vadd.xlane.f32.xlu0 %v150
    %v152 = vpop.xlane.xlu0 %151
    %v153 = vrcp.pop 32.0
    %v154 = vmul.f32 %v149, %v153
    %v155 = vmul.f32 %v152, %v153
    %v156 = vsub.f32 %v145, %v154
    %v157 = vsub.f32 %v146, %v155
    %v158 = vmul.f32 %v156, %v156
    %v159 = vmul.f32 %v157, %v157
    %v160 = vsel %vm126, %v158, 0.0
    %161 = vadd.xlane.f32.xlu0 %v160
    %v162 = vpop.xlane.xlu0 %161
    %v163 = vsel %vm126, %v159, 0.0
    %164 = vadd.xlane.f32.xlu0 %v163
    %v165 = vpop.xlane.xlu0 %164
    %v166 = vmul.f32 %v162, %v153
    %v167 = vmul.f32 %v165, %v153
    %v168 = vadd.f32 %v166, 1e-12
    %v169 = vadd.f32 %v167, 1e-12
    %v170 = vrsqrt.pop %v168
    %v171 = vrsqrt.pop %v169
    %v172 = vmul.f32 %v156, %v170
    %v173 = vmul.f32 %v157, %v171
    %v174 = vld [vmem:[%s4] sm:$0x1]
    %v176 = vlaneseq
    %v177 = vshrl.u32 %v176, 7
    %v178 = vsub.s32 0, %v177
    %v179 = vrot.slane %v174, %v178
    %v181 = vmul.f32 %v172, %v179
    %v182 = vmul.f32 %v173, %v179
    %v183 = vld [vmem:[%s5] sm:$0x1]
    %v185 = vlaneseq
    %v186 = vshrl.u32 %v185, 7
    %v187 = vsub.s32 0, %v186
    %v188 = vrot.slane %v183, %v187
    %v190 = vadd.f32 %v181, %v188
    %v191 = vadd.f32 %v182, %v188
    %192 = vst.msk [vmem:[%s6] sm:$0xff] %vm126, %v190
    %193 = vst.msk [vmem:[%s6 + $0x8] sm:$0xff] %vm126, %v191
  $region33: #{_lambda_.17} parent=0 // pred_fallthru
    _
  // Predicated region
  $region34: #{_lambda_.17} parent=0 // pred_check
    _
  $region35: #{_lambda_.17} parent=0 // pred_check_branch
    %195 = sbr.rel (0) target = $region37
  $region36: #{_lambda_.17} parent=0 // pred_region
    _
  $region37: #{_lambda_.17} parent=0 // pred_fallthru
    _
  // Predicated region
  $region38: #{_lambda_.17} parent=0 // pred_check
    _
  $region39: #{_lambda_.17} parent=0 // pred_check_branch
    %197 = sbr.rel (0) target = $region41
  $region40: #{_lambda_.17} parent=0 // pred_region
    _
  $region41: #{_lambda_.17} parent=0 // pred_fallthru
    _

// kernel: _lambda_.23
$region0: #{_lambda_.23}
  #allocation0 [shape = 'u32[]', space=smem, size = 0x4, offset = 0x4, fixed_abs, tag = 'smem constant byte address 0x4 - core index']
  #allocation1 [shape = 'u32[144,128]{1,0:T(1,128)}', space=vmem, size = 0x12000, scoped, tag = 'internal scratch']
  #allocation2 [shape = 'f32[2,32]{1,0:T(2,128)}', space=vmem, size = 0x400, scoped, tag = 'scratch operand']
  %s0 = inlined_call_operand.vmem [shape: f32[2,32], index: 0, kind: input, shape index: {}]
  %s1 = inlined_call_operand.vmem [shape: f32[32,32], index: 1, kind: input, shape index: {}]
  %s2 = inlined_call_operand.vmem [shape: f32[1,32], index: 2, kind: input, shape index: {}]
  %s3 = inlined_call_operand.hbm [shape: f32[2,32], index: 3, kind: output, shape index: {}]
  %s4 = sld [smem:[#allocation0]]
  $region30: #{_lambda_.23} parent=0
    _
  %s6 = ssub.s32 1, %s4
  %s7 = scalar_select 0, %s6, %s4
  $region1: #{_lambda_.23} parent=0
    #allocation3 [shape = 'u8[1024]{0}', space=vmem, size = 0x400, scoped, tag = 'output window, operand 0, single buffered']
    #allocation4 [shape = 's32[1]{0}', space=sflag, size = 0x4, scoped, tag = 'scoped memory for _lambda_.23']
    %8 = vsyncpa [#allocation4], 0
    // Predicated region
    $region2: #{_lambda_.23} parent=1 // pred_check
      _
    $region3: #{_lambda_.23} parent=1 // pred_check_branch
      %10 = sbr.rel (0) target = $region5
    $region4: #{_lambda_.23} parent=1 // pred_region
      _
    $region5: #{_lambda_.23} parent=1 // pred_fallthru
      _
    // Predicated region
    $region6: #{_lambda_.23} parent=1 // pred_check
      _
    $region7: #{_lambda_.23} parent=1 // pred_check_branch
      %12 = sbr.rel (0) target = $region9
    $region8: #{_lambda_.23} parent=1 // pred_region
      _
    $region9: #{_lambda_.23} parent=1 // pred_fallthru
      _
    // Predicated region
    $region10: #{_lambda_.23} parent=1 // pred_check
      _
    $region11: #{_lambda_.23} parent=1 // pred_check_branch
      %14 = sbr.rel (0) target = $region13
    $region12: #{_lambda_.23} parent=1 // pred_region
      _
    $region13: #{_lambda_.23} parent=1 // pred_fallthru
      _
    %p15 = scmp.eq.s32.totalorder 0, 0
    // Predicated region
    $region14: #{_lambda_.23} parent=1 // pred_check
      %p16 = pneg %p15
    $region15: #{_lambda_.23} parent=1 // pred_check_branch
      %18 = sbr.rel (%p16) target = $region17
    $region16: #{_lambda_.23} parent=1 // pred_region
      %vm19 = vcmask 254976
      %20 = vst.msk [vmem:[#allocation2] sm:$0x3] %vm19, 0.0
    $region17: #{_lambda_.23} parent=1 // pred_fallthru
      _
    %v21 = vld [vmem:[#allocation2] sm:$0x3]
    %v22 = vld [vmem:[%s0] sm:$0x3]
    %v23 = vld [vmem:[%s1] sm:$0xff]
    %v24 = vld [vmem:[%s1 + $0x8] sm:$0xff]
    %v25 = vld [vmem:[%s1 + $0x10] sm:$0xff]
    %v26 = vld [vmem:[%s1 + $0x18] sm:$0xff]
    %vm27 = vcmask 261120
    %v29 = vsel %vm27, %v22, 0
    %31 = vmatprep.subr.mxu0 0.0
    %32 = vmatpush1.msra.mxu0 %v23
    %33 = vmatprep.subr.mxu0 0.0
    %34 = vmatpush1.msra.mxu0 %v24
    %35 = vmatprep.subr.mxu0 0.0
    %36 = vmatpush1.msra.mxu0 %v25
    %37 = vmatprep.subr.mxu0 0.0
    %38 = vmatpush1.msra.mxu0 %v26
    %39 = vmatprep.subr.mxu0 0.0
    %40 = vmatpush1.msra.mxu0 0.0
    %41 = vmatprep.subr.mxu0 0.0
    %42 = vmatpush1.msra.mxu0 0.0
    %43 = vmatprep.subr.mxu0 0.0
    %44 = vmatpush1.msra.mxu0 0.0
    %45 = vmatprep.subr.mxu0 0.0
    %46 = vmatpush1.msra.mxu0 0.0
    %47 = vmatprep.subr.mxu0 0.0
    %48 = vmatpush1.msra.mxu0 0.0
    %49 = vmatprep.subr.mxu0 0.0
    %50 = vmatpush1.msra.mxu0 0.0
    %51 = vmatprep.subr.mxu0 0.0
    %52 = vmatpush1.msra.mxu0 0.0
    %53 = vmatprep.subr.mxu0 0.0
    %54 = vmatpush1.msra.mxu0 0.0
    %55 = vmatprep.subr.mxu0 0.0
    %56 = vmatpush1.msra.mxu0 0.0
    %57 = vmatprep.subr.mxu0 0.0
    %58 = vmatpush1.msra.mxu0 0.0
    %59 = vmatprep.subr.mxu0 0.0
    %60 = vmatpush1.msra.mxu0 0.0
    %61 = vmatprep.subr.mxu0 0.0
    %62 = vmatpush1.msra.mxu0 0.0
    %63 = vmatprep.subr.mxu0 0.0
    %64 = vmatpush1.msra.mxu0 0.0
    %65 = vmatprep.subr.mxu0 0.0
    %66 = vmatpush1.msra.mxu0 0.0
    %67 = vmatprep.subr.mxu0 0.0
    %68 = vmatpush1.msra.mxu0 0.0
    %69 = vmatprep.subr.mxu0 0.0
    %70 = vmatpush1.msra.mxu0 0.0
    %71 = vmatprep.subr.mxu0 0.0
    %72 = vmatpush1.msra.mxu0 0.0
    %73 = vmatprep.subr.mxu0 0.0
    %74 = vmatpush1.msra.mxu0 0.0
    %75 = vmatprep.subr.mxu0 0.0
    %76 = vmatpush1.msra.mxu0 0.0
    %77 = vmatprep.subr.mxu0 0.0
    %78 = vmatpush1.msra.mxu0 0.0
    %79 = vmatprep.subr.mxu0 0.0
    %80 = vmatpush1.msra.mxu0 0.0
    %81 = vmatprep.subr.mxu0 0.0
    %82 = vmatpush1.msra.mxu0 0.0
    %83 = vmatprep.subr.mxu0 0.0
    %84 = vmatpush1.msra.mxu0 0.0
    %85 = vmatprep.subr.mxu0 0.0
    %86 = vmatpush1.msra.mxu0 0.0
    %87 = vmatprep.subr.mxu0 0.0
    %88 = vmatpush1.msra.mxu0 0.0
    %89 = vmatprep.subr.mxu0 0.0
    %90 = vmatpush1.msra.mxu0 0.0
    %91 = vmatprep.subr.mxu0 0.0
    %92 = vmatpush1.msra.mxu0 0.0
    %93 = vmatprep.subr.mxu0 0.0
    %94 = vmatpush1.msra.mxu0 0.0
    %95 = vmatprep.mubr.f32.mxu0 0.0
    %96 = vmatmul.mubr.f32.gmra.mrb[0].mxu0 %v29
    %v97 = vpop.f32.mrb[0].mxu0
    %v98 = vadd.f32 0.0, %v97
    %v99 = vpop.f32.mrb[0].mxu0
    %100 = vdwg.mxu0
    %v101 = vadd.f32 %v21, %v98
    %vm102 = vcmask 254976
    %103 = vst.msk [vmem:[#allocation2] sm:$0x3] %vm102, %v101
    // Predicated region
    $region18: #{_lambda_.23} parent=1 // pred_check
      %p104 = pneg %p15
    $region19: #{_lambda_.23} parent=1 // pred_check_branch
      %106 = sbr.rel (%p104) target = $region21
    $region20: #{_lambda_.23} parent=1 // pred_region
      %v107 = vld [vmem:[#allocation2] sm:$0x3]
      %v108 = vld [vmem:[%s2] sm:$0x1]
      %v110 = vlaneseq
      %v111 = vshrl.u32 %v110, 7
      %v112 = vsub.s32 0, %v111
      %v113 = vrot.slane %v108, %v112
      %v115 = vadd.f32 %v107, %v113
      %v116 = vtanh.pop %v115
      %117 = vst.msk [vmem:[#allocation3] sm:$0x3] %vm102, %v116
    $region21: #{_lambda_.23} parent=1 // pred_fallthru
      _
    // Predicated region
    $region22: #{_lambda_.23} parent=1 // pred_check
      _
    $region23: #{_lambda_.23} parent=1 // pred_check_branch
      %119 = sbr.rel (0) target = $region25
    $region24: #{_lambda_.23} parent=1 // pred_region
      %s121 = ssub.s32 32, 32
      %122 = vsyncadd [#allocation4], %s121
      %s124 = sshll.u32 [#allocation3], 4
      %s125 = int_to_ptr.vmem [resolvable:$true] %s124
      %127 = dma.vmem_to_hbm [thread:$0]  %s125, 32, %s3, [#allocation4]
    $region25: #{_lambda_.23} parent=1 // pred_fallthru
      _
    // Predicated region
    $region26: #{_lambda_.23} parent=1 // pred_check
      _
    $region27: #{_lambda_.23} parent=1 // pred_check_branch
      %129 = sbr.rel (0) target = $region29
    $region28: #{_lambda_.23} parent=1 // pred_region
      %130 = dma.done [#allocation4], 32
    $region29: #{_lambda_.23} parent=1 // pred_fallthru
      _
    %131 = vsyncpa [#allocation4], 1

</llo_original>
